<compile_context>
chip_gen: v5e
topology: v5e:2x2
jax: 0.10.0
libtpu: 0.0.40
codegen_flags: <defaults>
</compile_context>

<pallas_src>
import functools

import jax
import jax.numpy as jnp
from jax import lax
from jax.experimental import pallas as pl
from jax.experimental.pallas import tpu as pltpu

LN_EPS = 1e-5


def _mlp_kernel(x_ref, w1_ref, w2_ref, p1_ref, p2_ref, out_ref,
                h_ref, s1_ref, y_ref, v1_ref, v2_ref,
                *, tau, v_threshold, t_blk, unroll):
    t_idx = pl.program_id(1)

    @pl.when(t_idx == 0)
    def _():
        # Reset LIF membrane potentials at the start of each batch element's
        # time sequence (the t grid axis is the inner, sequential axis).
        v1_ref[...] = jnp.zeros_like(v1_ref)
        v2_ref[...] = jnp.zeros_like(v2_ref)

    inv_tau = jnp.float32(1.0 / tau)
    thr = jnp.float32(v_threshold)

    L, D_in = x_ref.shape[1], x_ref.shape[2]
    H = w1_ref.shape[1]
    D_out = w2_ref.shape[1]
    M = t_blk * L

    # Packed LayerNorm/bias params: rows are (bias, gamma, beta), f32.
    b1, g1, be1 = p1_ref[0:1, :], p1_ref[1:2, :], p1_ref[2:3, :]
    b2, g2, be2 = p2_ref[0:1, :], p2_ref[1:2, :], p2_ref[2:3, :]

    # ---- Phase 1: batched fc1 (bf16 MXU, f32 acc) + LayerNorm over the tile ----
    x_flat = x_ref[...].reshape(M, D_in).astype(jnp.bfloat16)
    h = jnp.dot(x_flat, w1_ref[...], preferred_element_type=jnp.float32) + b1
    mu1 = jnp.mean(h, axis=-1, keepdims=True)
    msq1 = jnp.mean(h * h, axis=-1, keepdims=True)
    var1 = msq1 - mu1 * mu1
    h = (h - mu1) * lax.rsqrt(var1 + LN_EPS) * g1 + be1
    h_ref[...] = h.reshape(t_blk, L, H)

    # ---- Phase 2: sequential LIF1 (elementwise, membrane carried in vregs) ----
    def lif1_step(tt, v1):
        hv = h_ref[tt]                                   # (L, H) f32
        v1 = v1 + (hv - v1) * inv_tau
        sp = v1 >= thr
        s1_ref[tt] = sp.astype(jnp.bfloat16)             # exact {0,1}
        return jnp.where(sp, 0.0, v1)                    # hard reset

    v1_ref[...] = lax.fori_loop(0, t_blk, lif1_step, v1_ref[...], unroll=unroll)

    # ---- Phase 3: batched fc2 (bf16 MXU) + LayerNorm over the tile ----
    s1 = s1_ref[...].reshape(M, H)
    y = jnp.dot(s1, w2_ref[...], preferred_element_type=jnp.float32) + b2
    mu2 = jnp.mean(y, axis=-1, keepdims=True)
    msq2 = jnp.mean(y * y, axis=-1, keepdims=True)
    var2 = msq2 - mu2 * mu2
    y = (y - mu2) * lax.rsqrt(var2 + LN_EPS) * g2 + be2
    y_ref[...] = y.reshape(t_blk, L, D_out)

    # ---- Phase 4: sequential LIF2 + spike writeback ----
    def lif2_step(tt, v2):
        yv = y_ref[tt]                                   # (L, D_out) f32
        v2 = v2 + (yv - v2) * inv_tau
        sp = v2 >= thr
        out_ref[tt] = sp.astype(out_ref.dtype)           # bf16 spikes
        return jnp.where(sp, 0.0, v2)

    v2_ref[...] = lax.fori_loop(0, t_blk, lif2_step, v2_ref[...], unroll=unroll)


def spike_mlp(x, params, *, tau, common_thr, t_blk=None):
    """x: [B, T, L, D_in] (f32) -> spikes [B, T, L, D_out] (bfloat16, values {0,1})."""
    B, T, L, D_in = x.shape
    H = params["w1"].shape[1]
    D_out = params["w2"].shape[1]
    t_blk = T if t_blk is None else t_blk
    assert T % t_blk == 0, "t_blk must divide T"

    # bf16 weights for the MXU; LN/bias params packed into (3, D) f32 rows.
    w1 = params["w1"].astype(jnp.bfloat16)
    w2 = params["w2"].astype(jnp.bfloat16)
    p1 = jnp.stack([params["b1"], params["g1"], params["be1"]]).astype(jnp.float32)
    p2 = jnp.stack([params["b2"], params["g2"], params["be2"]]).astype(jnp.float32)

    unroll = min(t_blk, 8)   # bounded unroll on the elementwise LIF scans
    kernel = functools.partial(_mlp_kernel, tau=float(tau),
                               v_threshold=float(common_thr),
                               t_blk=t_blk, unroll=unroll)

    out = pl.pallas_call(
        kernel,
        out_shape=jax.ShapeDtypeStruct((B, T, L, D_out), jnp.bfloat16),
        grid_spec=pltpu.PrefetchScalarGridSpec(
            num_scalar_prefetch=0,
            grid=(B, T // t_blk),
            in_specs=[
                # x: one (squeezed) batch element, t_blk time steps, full
                # (L, D_in) slab -> kernel ref shape (t_blk, L, D_in), f32.
                pl.BlockSpec((None, t_blk, L, D_in), lambda b, t: (b, t, 0, 0)),
                # Weights & LN params: constant block index -> DMA'd once and
                # kept resident in VMEM for the whole grid (no per-batch re-DMA).
                pl.BlockSpec((D_in, H), lambda b, t: (0, 0)),
                pl.BlockSpec((H, D_out), lambda b, t: (0, 0)),
                pl.BlockSpec((3, H), lambda b, t: (0, 0)),
                pl.BlockSpec((3, D_out), lambda b, t: (0, 0)),
            ],
            out_specs=pl.BlockSpec((None, t_blk, L, D_out),
                                   lambda b, t: (b, t, 0, 0)),
            scratch_shapes=[
                pltpu.VMEM((t_blk, L, H), jnp.float32),      # LN1 output staging
                pltpu.VMEM((t_blk, L, H), jnp.bfloat16),     # spike1 staging (fc2 input)
                pltpu.VMEM((t_blk, L, D_out), jnp.float32),  # LN2 output staging
                pltpu.VMEM((L, H), jnp.float32),             # LIF1 membrane
                pltpu.VMEM((L, D_out), jnp.float32),         # LIF2 membrane
            ],
        ),
        compiler_params=pltpu.CompilerParams(
            dimension_semantics=("parallel", "arbitrary"),
            vmem_limit_bytes=48 * 1024 * 1024,   # sized against v7x's 64 MiB
        ),
    )(x, w1, w2, p1, p2)
    return out


def spike_mlp_reference(x, params, *, tau, common_thr):
    """Pure-JAX reference with the same numerics (bf16 matmul inputs, f32 rest)."""
    B, T, L, D_in = x.shape
    H = params["w1"].shape[1]
    D_out = params["w2"].shape[1]
    x_bf = x.astype(jnp.bfloat16)
    w1 = params["w1"].astype(jnp.bfloat16)
    w2 = params["w2"].astype(jnp.bfloat16)
    x_tnd = jnp.transpose(x_bf, (1, 0, 2, 3)).reshape(T, B * L, D_in)

    def ln(z, g, b):
        mu = jnp.mean(z, axis=-1, keepdims=True)
        msq = jnp.mean(z * z, axis=-1, keepdims=True)
        var = msq - mu * mu
        return (z - mu) * lax.rsqrt(var + LN_EPS) * g + b

    def step(carry, x_t):
        v1, v2 = carry
        h = ln(jnp.dot(x_t, w1, preferred_element_type=jnp.float32)
               + params["b1"], params["g1"], params["be1"])
        v1 = v1 + (h - v1) / tau
        s1 = v1 >= common_thr
        v1 = jnp.where(s1, 0.0, v1)
        y = ln(jnp.dot(s1.astype(jnp.bfloat16), w2,
                       preferred_element_type=jnp.float32)
               + params["b2"], params["g2"], params["be2"])
        v2 = v2 + (y - v2) / tau
        s2 = v2 >= common_thr
        v2 = jnp.where(s2, 0.0, v2)
        return (v1, v2), s2.astype(jnp.float32)

    v1 = jnp.zeros((B * L, H), jnp.float32)
    v2 = jnp.zeros((B * L, D_out), jnp.float32)
    _, out = lax.scan(step, (v1, v2), x_tnd)
    return jnp.transpose(out.reshape(T, B, L, D_out), (1, 0, 2, 3))


def init_params(key, in_features, hidden_features, out_features):
    k1, k2, k3, k4 = jax.random.split(key, 4)
    lim1 = 1.0 / jnp.sqrt(in_features)
    lim2 = 1.0 / jnp.sqrt(hidden_features)
    return {
        # weights stored as [in, out] (transposed vs torch nn.Linear.weight)
        "w1": jax.random.uniform(k1, (in_features, hidden_features),
                                 jnp.float32, -lim1, lim1),
        "b1": jax.random.uniform(k2, (hidden_features,), jnp.float32,
                                 -lim1, lim1),
        "g1": jnp.ones((hidden_features,), jnp.float32),
        "be1": jnp.zeros((hidden_features,), jnp.float32),
        "w2": jax.random.uniform(k3, (hidden_features, out_features),
                                 jnp.float32, -lim2, lim2),
        "b2": jax.random.uniform(k4, (out_features,), jnp.float32,
                                 -lim2, lim2),
        "g2": jnp.ones((out_features,), jnp.float32),
        "be2": jnp.zeros((out_features,), jnp.float32),
    }


if __name__ == "__main__":
    # Small but lane-dense shapes (D_in, H, D_out multiples of 128).
    B, T, L = 2, 8, 16
    D_in, H = 128, 256
    D_out = D_in            # out_features defaults to in_features
    tau, common_thr = 2.0, 1.0

    key = jax.random.PRNGKey(0)
    kx, kp = jax.random.split(key)
    x = jax.random.normal(kx, (B, T, L, D_in), jnp.float32)
    params = init_params(kp, D_in, H, D_out)

    # Default t_blk=T -> one grid step per batch element; batched matmuls see
    # M = T*L = 128 rows.
    out = spike_mlp(x, params, tau=tau, common_thr=common_thr)
    out = jax.block_until_ready(out)
    assert out.shape == (B, T, L, D_out)
    assert out.dtype == jnp.bfloat16

    ref = spike_mlp_reference(x, params, tau=tau, common_thr=common_thr)
    # Spikes are binary; allow a vanishingly small flip rate from sub-ulp
    # reduction-order differences near the firing threshold.
    mismatch = float(jnp.mean(jnp.abs(out.astype(jnp.float32) - ref)))
    assert mismatch < 2e-3, f"spike mismatch rate too high: {mismatch}"

    print("KERNEL_OK")
</pallas_src>

<mosaic_0001>
module attributes {stable_mosaic.version = 11 : i64} {
  func.func @_mlp_kernel(%arg0: i32, %arg1: i32, %arg2: memref<1x8x16x128xf32, #tpu.memory_space<vmem>>, %arg3: memref<128x256xbf16, #tpu.memory_space<vmem>>, %arg4: memref<256x128xbf16, #tpu.memory_space<vmem>>, %arg5: memref<3x256xf32, #tpu.memory_space<vmem>>, %arg6: memref<3x128xf32, #tpu.memory_space<vmem>>, %arg7: memref<1x8x16x128xbf16, #tpu.memory_space<vmem>>, %arg8: memref<8x16x256xf32, #tpu.memory_space<vmem>>, %arg9: memref<8x16x256xbf16, #tpu.memory_space<vmem>>, %arg10: memref<8x16x128xf32, #tpu.memory_space<vmem>>, %arg11: memref<16x256xf32, #tpu.memory_space<vmem>>, %arg12: memref<16x128xf32, #tpu.memory_space<vmem>>) attributes {dimension_semantics = [#tpu.dimension_semantics<parallel>, #tpu.dimension_semantics<arbitrary>], iteration_bounds = array<i64: 2, 1>, scalar_prefetch = 0 : i64, scratch_operands = 5 : i64, tpu.core_type = #tpu.core_type<tc>, window_params = [{transform_indices = @transform_0, window_bounds = array<i64: 1, 8, 16, 128>}, {pipeline_mode = #tpu.pipeline_mode<synchronous>, transform_indices = @transform_1, window_bounds = array<i64: 128, 256>}, {pipeline_mode = #tpu.pipeline_mode<synchronous>, transform_indices = @transform_2, window_bounds = array<i64: 256, 128>}, {pipeline_mode = #tpu.pipeline_mode<synchronous>, transform_indices = @transform_3, window_bounds = array<i64: 3, 256>}, {pipeline_mode = #tpu.pipeline_mode<synchronous>, transform_indices = @transform_4, window_bounds = array<i64: 3, 128>}, {transform_indices = @transform_5, window_bounds = array<i64: 1, 8, 16, 128>}]} {
    %c0_i32 = arith.constant 0 : i32
    %0 = arith.cmpi eq, %arg1, %c0_i32 : i32
    %1 = arith.extui %0 : i1 to i32
    %c0_i32_0 = arith.constant 0 : i32
    %2 = arith.cmpi ne, %1, %c0_i32_0 : i32
    scf.if %2 {
      %cst_148 = arith.constant 0.000000e+00 : f32
      %363 = vector.broadcast %cst_148 : f32 to vector<16x256xf32>
      %c0_149 = arith.constant 0 : index
      %c0_150 = arith.constant 0 : index
      %364 = vector.load %arg11[%c0_149, %c0_150] : memref<16x256xf32, #tpu.memory_space<vmem>>, vector<16x256xf32>
      tpu.vector_store %arg11[%c0_149, %c0_150], %363 {strides = array<i32>} : memref<16x256xf32, #tpu.memory_space<vmem>>, vector<16x256xf32>,
      %cst_151 = arith.constant 0.000000e+00 : f32
      %365 = vector.broadcast %cst_151 : f32 to vector<16x128xf32>
      %c0_152 = arith.constant 0 : index
      %c0_153 = arith.constant 0 : index
      %366 = vector.load %arg12[%c0_152, %c0_153] : memref<16x128xf32, #tpu.memory_space<vmem>>, vector<16x128xf32>
      tpu.vector_store %arg12[%c0_152, %c0_153], %365 {strides = array<i32>} : memref<16x128xf32, #tpu.memory_space<vmem>>, vector<16x128xf32>,
    } else {
    }
    %c0 = arith.constant 0 : index
    %c0_1 = arith.constant 0 : index
    %3 = vector.load %arg5[%c0, %c0_1] : memref<3x256xf32, #tpu.memory_space<vmem>>, vector<1x256xf32>
    %c1 = arith.constant 1 : index
    %c0_2 = arith.constant 0 : index
    %4 = vector.load %arg5[%c1, %c0_2] : memref<3x256xf32, #tpu.memory_space<vmem>>, vector<1x256xf32>
    %c2 = arith.constant 2 : index
    %c0_3 = arith.constant 0 : index
    %5 = vector.load %arg5[%c2, %c0_3] : memref<3x256xf32, #tpu.memory_space<vmem>>, vector<1x256xf32>
    %c0_4 = arith.constant 0 : index
    %c0_5 = arith.constant 0 : index
    %6 = vector.load %arg6[%c0_4, %c0_5] : memref<3x128xf32, #tpu.memory_space<vmem>>, vector<1x128xf32>
    %c1_6 = arith.constant 1 : index
    %c0_7 = arith.constant 0 : index
    %7 = vector.load %arg6[%c1_6, %c0_7] : memref<3x128xf32, #tpu.memory_space<vmem>>, vector<1x128xf32>
    %c2_8 = arith.constant 2 : index
    %c0_9 = arith.constant 0 : index
    %8 = vector.load %arg6[%c2_8, %c0_9] : memref<3x128xf32, #tpu.memory_space<vmem>>, vector<1x128xf32>
    %c0_10 = arith.constant 0 : index
    %c0_11 = arith.constant 0 : index
    %c0_12 = arith.constant 0 : index
    %c0_13 = arith.constant 0 : index
    %9 = vector.load %arg2[%c0_10, %c0_11, %c0_12, %c0_13] : memref<1x8x16x128xf32, #tpu.memory_space<vmem>>, vector<1x8x16x128xf32>
    %10 = vector.shape_cast %9 : vector<1x8x16x128xf32> to vector<8x16x128xf32>
    %11 = vector.shape_cast %10 : vector<8x16x128xf32> to vector<128x128xf32>
    %12 = arith.truncf %11 : vector<128x128xf32> to vector<128x128xbf16>
    %c0_14 = arith.constant 0 : index
    %c0_15 = arith.constant 0 : index
    %13 = vector.load %arg3[%c0_14, %c0_15] : memref<128x256xbf16, #tpu.memory_space<vmem>>, vector<128x256xbf16>
    %cst = arith.constant dense<0.000000e+00> : vector<128x256xf32>
    %14 = tpu.matmul %12, %13, %cst {dimension_numbers = #tpu.dot_dimension_numbers<[1], [0], [0], [1], [0, 0, 1, 1], [], []>} : vector<128x128xbf16>, vector<128x256xbf16>, vector<128x256xf32> -> vector<128x256xf32>
    %15 = vector.broadcast %3 : vector<1x256xf32> to vector<128x256xf32>
    %16 = arith.addf %14, %15 : vector<128x256xf32>
    %cst_16 = arith.constant dense<0.000000e+00> : vector<128xf32>
    %17 = vector.multi_reduction <add>, %16, %cst_16 [1] : vector<128x256xf32> to vector<128xf32>
    %18 = vector.shape_cast %17 : vector<128xf32> to vector<128x1xf32>
    %cst_17 = arith.constant 2.560000e+02 : f32
    %19 = vector.broadcast %cst_17 : f32 to vector<128x1xf32>
    %20 = arith.divf %18, %19 : vector<128x1xf32>
    %21 = arith.mulf %16, %16 : vector<128x256xf32>
    %cst_18 = arith.constant dense<0.000000e+00> : vector<128xf32>
    %22 = vector.multi_reduction <add>, %21, %cst_18 [1] : vector<128x256xf32> to vector<128xf32>
    %23 = vector.shape_cast %22 : vector<128xf32> to vector<128x1xf32>
    %cst_19 = arith.constant 2.560000e+02 : f32
    %24 = vector.broadcast %cst_19 : f32 to vector<128x1xf32>
    %25 = arith.divf %23, %24 : vector<128x1xf32>
    %26 = arith.mulf %20, %20 : vector<128x1xf32>
    %27 = arith.subf %25, %26 : vector<128x1xf32>
    %28 = vector.broadcast %20 : vector<128x1xf32> to vector<128x256xf32>
    %29 = arith.subf %16, %28 : vector<128x256xf32>
    %cst_20 = arith.constant 9.99999974E-6 : f32
    %30 = vector.broadcast %cst_20 : f32 to vector<128x1xf32>
    %31 = arith.addf %27, %30 : vector<128x1xf32>
    %32 = math.rsqrt %31 : vector<128x1xf32>
    %33 = vector.broadcast %32 : vector<128x1xf32> to vector<128x256xf32>
    %34 = arith.mulf %29, %33 : vector<128x256xf32>
    %35 = vector.broadcast %4 : vector<1x256xf32> to vector<128x256xf32>
    %36 = arith.mulf %34, %35 : vector<128x256xf32>
    %37 = vector.broadcast %5 : vector<1x256xf32> to vector<128x256xf32>
    %38 = arith.addf %36, %37 : vector<128x256xf32>
    %39 = vector.shape_cast %38 : vector<128x256xf32> to vector<8x16x256xf32>
    %c0_21 = arith.constant 0 : index
    %c0_22 = arith.constant 0 : index
    %c0_23 = arith.constant 0 : index
    %40 = vector.load %arg8[%c0_21, %c0_22, %c0_23] : memref<8x16x256xf32, #tpu.memory_space<vmem>>, vector<8x16x256xf32>
    tpu.vector_store %arg8[%c0_21, %c0_22, %c0_23], %39 {strides = array<i32>} : memref<8x16x256xf32, #tpu.memory_space<vmem>>, vector<8x16x256xf32>,
    %c0_24 = arith.constant 0 : index
    %c0_25 = arith.constant 0 : index
    %41 = vector.load %arg11[%c0_24, %c0_25] : memref<16x256xf32, #tpu.memory_space<vmem>>, vector<16x256xf32>
    %cst_26 = arith.constant 5.000000e-01 : f32
    %cst_27 = arith.constant 1.000000e+00 : f32
    %c0_i32_28 = arith.constant 0 : i32
    %42 = arith.index_cast %c0_i32_28 : i32 to index
    %c0_29 = arith.constant 0 : index
    %c0_30 = arith.constant 0 : index
    %43 = vector.load %arg8[%42, %c0_29, %c0_30] : memref<8x16x256xf32, #tpu.memory_space<vmem>>, vector<1x16x256xf32>
    %44 = vector.shape_cast %43 : vector<1x16x256xf32> to vector<16x256xf32>
    %45 = arith.subf %44, %41 : vector<16x256xf32>
    %46 = vector.broadcast %cst_26 : f32 to vector<16x256xf32>
    %47 = arith.mulf %45, %46 : vector<16x256xf32>
    %48 = arith.addf %41, %47 : vector<16x256xf32>
    %49 = vector.broadcast %cst_27 : f32 to vector<16x256xf32>
    %50 = arith.cmpf oge, %48, %49 : vector<16x256xf32>
    %51 = arith.extui %50 : vector<16x256xi1> to vector<16x256xi32>
    %52 = arith.sitofp %51 : vector<16x256xi32> to vector<16x256xf32>
    %53 = arith.truncf %52 : vector<16x256xf32> to vector<16x256xbf16>
    %54 = arith.index_cast %c0_i32_28 : i32 to index
    %c0_31 = arith.constant 0 : index
    %c0_32 = arith.constant 0 : index
    %55 = vector.load %arg9[%54, %c0_31, %c0_32] : memref<8x16x256xbf16, #tpu.memory_space<vmem>>, vector<1x16x256xbf16>
    %56 = vector.shape_cast %55 : vector<1x16x256xbf16> to vector<16x256xbf16>
    %57 = vector.shape_cast %53 : vector<16x256xbf16> to vector<1x16x256xbf16>
    tpu.vector_store %arg9[%54, %c0_31, %c0_32], %57 {strides = array<i32>} : memref<8x16x256xbf16, #tpu.memory_space<vmem>>, vector<1x16x256xbf16>,
    %cst_33 = arith.constant 0.000000e+00 : f32
    %58 = vector.broadcast %cst_33 : f32 to vector<16x256xf32>
    %59 = arith.select %50, %58, %48 : vector<16x256xi1>, vector<16x256xf32>
    %c1_i32 = arith.constant 1 : i32
    %60 = arith.index_cast %c1_i32 : i32 to index
    %c0_34 = arith.constant 0 : index
    %c0_35 = arith.constant 0 : index
    %61 = vector.load %arg8[%60, %c0_34, %c0_35] : memref<8x16x256xf32, #tpu.memory_space<vmem>>, vector<1x16x256xf32>
    %62 = vector.shape_cast %61 : vector<1x16x256xf32> to vector<16x256xf32>
    %63 = arith.subf %62, %59 : vector<16x256xf32>
    %64 = vector.broadcast %cst_26 : f32 to vector<16x256xf32>
    %65 = arith.mulf %63, %64 : vector<16x256xf32>
    %66 = arith.addf %59, %65 : vector<16x256xf32>
    %67 = vector.broadcast %cst_27 : f32 to vector<16x256xf32>
    %68 = arith.cmpf oge, %66, %67 : vector<16x256xf32>
    %69 = arith.extui %68 : vector<16x256xi1> to vector<16x256xi32>
    %70 = arith.sitofp %69 : vector<16x256xi32> to vector<16x256xf32>
    %71 = arith.truncf %70 : vector<16x256xf32> to vector<16x256xbf16>
    %72 = arith.index_cast %c1_i32 : i32 to index
    %c0_36 = arith.constant 0 : index
    %c0_37 = arith.constant 0 : index
    %73 = vector.load %arg9[%72, %c0_36, %c0_37] : memref<8x16x256xbf16, #tpu.memory_space<vmem>>, vector<1x16x256xbf16>
    %74 = vector.shape_cast %73 : vector<1x16x256xbf16> to vector<16x256xbf16>
    %75 = vector.shape_cast %71 : vector<16x256xbf16> to vector<1x16x256xbf16>
    tpu.vector_store %arg9[%72, %c0_36, %c0_37], %75 {strides = array<i32>} : memref<8x16x256xbf16, #tpu.memory_space<vmem>>, vector<1x16x256xbf16>,
    %cst_38 = arith.constant 0.000000e+00 : f32
    %76 = vector.broadcast %cst_38 : f32 to vector<16x256xf32>
    %77 = arith.select %68, %76, %66 : vector<16x256xi1>, vector<16x256xf32>
    %c2_i32 = arith.constant 2 : i32
    %78 = arith.index_cast %c2_i32 : i32 to index
    %c0_39 = arith.constant 0 : index
    %c0_40 = arith.constant 0 : index
    %79 = vector.load %arg8[%78, %c0_39, %c0_40] : memref<8x16x256xf32, #tpu.memory_space<vmem>>, vector<1x16x256xf32>
    %80 = vector.shape_cast %79 : vector<1x16x256xf32> to vector<16x256xf32>
    %81 = arith.subf %80, %77 : vector<16x256xf32>
    %82 = vector.broadcast %cst_26 : f32 to vector<16x256xf32>
    %83 = arith.mulf %81, %82 : vector<16x256xf32>
    %84 = arith.addf %77, %83 : vector<16x256xf32>
    %85 = vector.broadcast %cst_27 : f32 to vector<16x256xf32>
    %86 = arith.cmpf oge, %84, %85 : vector<16x256xf32>
    %87 = arith.extui %86 : vector<16x256xi1> to vector<16x256xi32>
    %88 = arith.sitofp %87 : vector<16x256xi32> to vector<16x256xf32>
    %89 = arith.truncf %88 : vector<16x256xf32> to vector<16x256xbf16>
    %90 = arith.index_cast %c2_i32 : i32 to index
    %c0_41 = arith.constant 0 : index
    %c0_42 = arith.constant 0 : index
    %91 = vector.load %arg9[%90, %c0_41, %c0_42] : memref<8x16x256xbf16, #tpu.memory_space<vmem>>, vector<1x16x256xbf16>
    %92 = vector.shape_cast %91 : vector<1x16x256xbf16> to vector<16x256xbf16>
    %93 = vector.shape_cast %89 : vector<16x256xbf16> to vector<1x16x256xbf16>
    tpu.vector_store %arg9[%90, %c0_41, %c0_42], %93 {strides = array<i32>} : memref<8x16x256xbf16, #tpu.memory_space<vmem>>, vector<1x16x256xbf16>,
    %cst_43 = arith.constant 0.000000e+00 : f32
    %94 = vector.broadcast %cst_43 : f32 to vector<16x256xf32>
    %95 = arith.select %86, %94, %84 : vector<16x256xi1>, vector<16x256xf32>
    %c3_i32 = arith.constant 3 : i32
    %96 = arith.index_cast %c3_i32 : i32 to index
    %c0_44 = arith.constant 0 : index
    %c0_45 = arith.constant 0 : index
    %97 = vector.load %arg8[%96, %c0_44, %c0_45] : memref<8x16x256xf32, #tpu.memory_space<vmem>>, vector<1x16x256xf32>
    %98 = vector.shape_cast %97 : vector<1x16x256xf32> to vector<16x256xf32>
    %99 = arith.subf %98, %95 : vector<16x256xf32>
    %100 = vector.broadcast %cst_26 : f32 to vector<16x256xf32>
    %101 = arith.mulf %99, %100 : vector<16x256xf32>
    %102 = arith.addf %95, %101 : vector<16x256xf32>
    %103 = vector.broadcast %cst_27 : f32 to vector<16x256xf32>
    %104 = arith.cmpf oge, %102, %103 : vector<16x256xf32>
    %105 = arith.extui %104 : vector<16x256xi1> to vector<16x256xi32>
    %106 = arith.sitofp %105 : vector<16x256xi32> to vector<16x256xf32>
    %107 = arith.truncf %106 : vector<16x256xf32> to vector<16x256xbf16>
    %108 = arith.index_cast %c3_i32 : i32 to index
    %c0_46 = arith.constant 0 : index
    %c0_47 = arith.constant 0 : index
    %109 = vector.load %arg9[%108, %c0_46, %c0_47] : memref<8x16x256xbf16, #tpu.memory_space<vmem>>, vector<1x16x256xbf16>
    %110 = vector.shape_cast %109 : vector<1x16x256xbf16> to vector<16x256xbf16>
    %111 = vector.shape_cast %107 : vector<16x256xbf16> to vector<1x16x256xbf16>
    tpu.vector_store %arg9[%108, %c0_46, %c0_47], %111 {strides = array<i32>} : memref<8x16x256xbf16, #tpu.memory_space<vmem>>, vector<1x16x256xbf16>,
    %cst_48 = arith.constant 0.000000e+00 : f32
    %112 = vector.broadcast %cst_48 : f32 to vector<16x256xf32>
    %113 = arith.select %104, %112, %102 : vector<16x256xi1>, vector<16x256xf32>
    %c4_i32 = arith.constant 4 : i32
    %114 = arith.index_cast %c4_i32 : i32 to index
    %c0_49 = arith.constant 0 : index
    %c0_50 = arith.constant 0 : index
    %115 = vector.load %arg8[%114, %c0_49, %c0_50] : memref<8x16x256xf32, #tpu.memory_space<vmem>>, vector<1x16x256xf32>
    %116 = vector.shape_cast %115 : vector<1x16x256xf32> to vector<16x256xf32>
    %117 = arith.subf %116, %113 : vector<16x256xf32>
    %118 = vector.broadcast %cst_26 : f32 to vector<16x256xf32>
    %119 = arith.mulf %117, %118 : vector<16x256xf32>
    %120 = arith.addf %113, %119 : vector<16x256xf32>
    %121 = vector.broadcast %cst_27 : f32 to vector<16x256xf32>
    %122 = arith.cmpf oge, %120, %121 : vector<16x256xf32>
    %123 = arith.extui %122 : vector<16x256xi1> to vector<16x256xi32>
    %124 = arith.sitofp %123 : vector<16x256xi32> to vector<16x256xf32>
    %125 = arith.truncf %124 : vector<16x256xf32> to vector<16x256xbf16>
    %126 = arith.index_cast %c4_i32 : i32 to index
    %c0_51 = arith.constant 0 : index
    %c0_52 = arith.constant 0 : index
    %127 = vector.load %arg9[%126, %c0_51, %c0_52] : memref<8x16x256xbf16, #tpu.memory_space<vmem>>, vector<1x16x256xbf16>
    %128 = vector.shape_cast %127 : vector<1x16x256xbf16> to vector<16x256xbf16>
    %129 = vector.shape_cast %125 : vector<16x256xbf16> to vector<1x16x256xbf16>
    tpu.vector_store %arg9[%126, %c0_51, %c0_52], %129 {strides = array<i32>} : memref<8x16x256xbf16, #tpu.memory_space<vmem>>, vector<1x16x256xbf16>,
    %cst_53 = arith.constant 0.000000e+00 : f32
    %130 = vector.broadcast %cst_53 : f32 to vector<16x256xf32>
    %131 = arith.select %122, %130, %120 : vector<16x256xi1>, vector<16x256xf32>
    %c5_i32 = arith.constant 5 : i32
    %132 = arith.index_cast %c5_i32 : i32 to index
    %c0_54 = arith.constant 0 : index
    %c0_55 = arith.constant 0 : index
    %133 = vector.load %arg8[%132, %c0_54, %c0_55] : memref<8x16x256xf32, #tpu.memory_space<vmem>>, vector<1x16x256xf32>
    %134 = vector.shape_cast %133 : vector<1x16x256xf32> to vector<16x256xf32>
    %135 = arith.subf %134, %131 : vector<16x256xf32>
    %136 = vector.broadcast %cst_26 : f32 to vector<16x256xf32>
    %137 = arith.mulf %135, %136 : vector<16x256xf32>
    %138 = arith.addf %131, %137 : vector<16x256xf32>
    %139 = vector.broadcast %cst_27 : f32 to vector<16x256xf32>
    %140 = arith.cmpf oge, %138, %139 : vector<16x256xf32>
    %141 = arith.extui %140 : vector<16x256xi1> to vector<16x256xi32>
    %142 = arith.sitofp %141 : vector<16x256xi32> to vector<16x256xf32>
    %143 = arith.truncf %142 : vector<16x256xf32> to vector<16x256xbf16>
    %144 = arith.index_cast %c5_i32 : i32 to index
    %c0_56 = arith.constant 0 : index
    %c0_57 = arith.constant 0 : index
    %145 = vector.load %arg9[%144, %c0_56, %c0_57] : memref<8x16x256xbf16, #tpu.memory_space<vmem>>, vector<1x16x256xbf16>
    %146 = vector.shape_cast %145 : vector<1x16x256xbf16> to vector<16x256xbf16>
    %147 = vector.shape_cast %143 : vector<16x256xbf16> to vector<1x16x256xbf16>
    tpu.vector_store %arg9[%144, %c0_56, %c0_57], %147 {strides = array<i32>} : memref<8x16x256xbf16, #tpu.memory_space<vmem>>, vector<1x16x256xbf16>,
    %cst_58 = arith.constant 0.000000e+00 : f32
    %148 = vector.broadcast %cst_58 : f32 to vector<16x256xf32>
    %149 = arith.select %140, %148, %138 : vector<16x256xi1>, vector<16x256xf32>
    %c6_i32 = arith.constant 6 : i32
    %150 = arith.index_cast %c6_i32 : i32 to index
    %c0_59 = arith.constant 0 : index
    %c0_60 = arith.constant 0 : index
    %151 = vector.load %arg8[%150, %c0_59, %c0_60] : memref<8x16x256xf32, #tpu.memory_space<vmem>>, vector<1x16x256xf32>
    %152 = vector.shape_cast %151 : vector<1x16x256xf32> to vector<16x256xf32>
    %153 = arith.subf %152, %149 : vector<16x256xf32>
    %154 = vector.broadcast %cst_26 : f32 to vector<16x256xf32>
    %155 = arith.mulf %153, %154 : vector<16x256xf32>
    %156 = arith.addf %149, %155 : vector<16x256xf32>
    %157 = vector.broadcast %cst_27 : f32 to vector<16x256xf32>
    %158 = arith.cmpf oge, %156, %157 : vector<16x256xf32>
    %159 = arith.extui %158 : vector<16x256xi1> to vector<16x256xi32>
    %160 = arith.sitofp %159 : vector<16x256xi32> to vector<16x256xf32>
    %161 = arith.truncf %160 : vector<16x256xf32> to vector<16x256xbf16>
    %162 = arith.index_cast %c6_i32 : i32 to index
    %c0_61 = arith.constant 0 : index
    %c0_62 = arith.constant 0 : index
    %163 = vector.load %arg9[%162, %c0_61, %c0_62] : memref<8x16x256xbf16, #tpu.memory_space<vmem>>, vector<1x16x256xbf16>
    %164 = vector.shape_cast %163 : vector<1x16x256xbf16> to vector<16x256xbf16>
    %165 = vector.shape_cast %161 : vector<16x256xbf16> to vector<1x16x256xbf16>
    tpu.vector_store %arg9[%162, %c0_61, %c0_62], %165 {strides = array<i32>} : memref<8x16x256xbf16, #tpu.memory_space<vmem>>, vector<1x16x256xbf16>,
    %cst_63 = arith.constant 0.000000e+00 : f32
    %166 = vector.broadcast %cst_63 : f32 to vector<16x256xf32>
    %167 = arith.select %158, %166, %156 : vector<16x256xi1>, vector<16x256xf32>
    %c7_i32 = arith.constant 7 : i32
    %168 = arith.index_cast %c7_i32 : i32 to index
    %c0_64 = arith.constant 0 : index
    %c0_65 = arith.constant 0 : index
    %169 = vector.load %arg8[%168, %c0_64, %c0_65] : memref<8x16x256xf32, #tpu.memory_space<vmem>>, vector<1x16x256xf32>
    %170 = vector.shape_cast %169 : vector<1x16x256xf32> to vector<16x256xf32>
    %171 = arith.subf %170, %167 : vector<16x256xf32>
    %172 = vector.broadcast %cst_26 : f32 to vector<16x256xf32>
    %173 = arith.mulf %171, %172 : vector<16x256xf32>
    %174 = arith.addf %167, %173 : vector<16x256xf32>
    %175 = vector.broadcast %cst_27 : f32 to vector<16x256xf32>
    %176 = arith.cmpf oge, %174, %175 : vector<16x256xf32>
    %177 = arith.extui %176 : vector<16x256xi1> to vector<16x256xi32>
    %178 = arith.sitofp %177 : vector<16x256xi32> to vector<16x256xf32>
    %179 = arith.truncf %178 : vector<16x256xf32> to vector<16x256xbf16>
    %180 = arith.index_cast %c7_i32 : i32 to index
    %c0_66 = arith.constant 0 : index
    %c0_67 = arith.constant 0 : index
    %181 = vector.load %arg9[%180, %c0_66, %c0_67] : memref<8x16x256xbf16, #tpu.memory_space<vmem>>, vector<1x16x256xbf16>
    %182 = vector.shape_cast %181 : vector<1x16x256xbf16> to vector<16x256xbf16>
    %183 = vector.shape_cast %179 : vector<16x256xbf16> to vector<1x16x256xbf16>
    tpu.vector_store %arg9[%180, %c0_66, %c0_67], %183 {strides = array<i32>} : memref<8x16x256xbf16, #tpu.memory_space<vmem>>, vector<1x16x256xbf16>,
    %cst_68 = arith.constant 0.000000e+00 : f32
    %184 = vector.broadcast %cst_68 : f32 to vector<16x256xf32>
    %185 = arith.select %176, %184, %174 : vector<16x256xi1>, vector<16x256xf32>
    %c8_i32 = arith.constant 8 : i32
    %c0_69 = arith.constant 0 : index
    %c0_70 = arith.constant 0 : index
    %186 = vector.load %arg11[%c0_69, %c0_70] : memref<16x256xf32, #tpu.memory_space<vmem>>, vector<16x256xf32>
    tpu.vector_store %arg11[%c0_69, %c0_70], %185 {strides = array<i32>} : memref<16x256xf32, #tpu.memory_space<vmem>>, vector<16x256xf32>,
    %c0_71 = arith.constant 0 : index
    %c0_72 = arith.constant 0 : index
    %c0_73 = arith.constant 0 : index
    %187 = vector.load %arg9[%c0_71, %c0_72, %c0_73] : memref<8x16x256xbf16, #tpu.memory_space<vmem>>, vector<8x16x256xbf16>
    %188 = vector.shape_cast %187 : vector<8x16x256xbf16> to vector<128x256xbf16>
    %c0_74 = arith.constant 0 : index
    %c0_75 = arith.constant 0 : index
    %189 = vector.load %arg4[%c0_74, %c0_75] : memref<256x128xbf16, #tpu.memory_space<vmem>>, vector<256x128xbf16>
    %cst_76 = arith.constant dense<0.000000e+00> : vector<128x128xf32>
    %190 = tpu.matmul %188, %189, %cst_76 {dimension_numbers = #tpu.dot_dimension_numbers<[1], [0], [0], [1], [0, 0, 1, 1], [], []>} : vector<128x256xbf16>, vector<256x128xbf16>, vector<128x128xf32> -> vector<128x128xf32>
    %191 = vector.broadcast %6 : vector<1x128xf32> to vector<128x128xf32>
    %192 = arith.addf %190, %191 : vector<128x128xf32>
    %cst_77 = arith.constant dense<0.000000e+00> : vector<128xf32>
    %193 = vector.multi_reduction <add>, %192, %cst_77 [1] : vector<128x128xf32> to vector<128xf32>
    %194 = vector.shape_cast %193 : vector<128xf32> to vector<128x1xf32>
    %cst_78 = arith.constant 1.280000e+02 : f32
    %195 = vector.broadcast %cst_78 : f32 to vector<128x1xf32>
    %196 = arith.divf %194, %195 : vector<128x1xf32>
    %197 = arith.mulf %192, %192 : vector<128x128xf32>
    %cst_79 = arith.constant dense<0.000000e+00> : vector<128xf32>
    %198 = vector.multi_reduction <add>, %197, %cst_79 [1] : vector<128x128xf32> to vector<128xf32>
    %199 = vector.shape_cast %198 : vector<128xf32> to vector<128x1xf32>
    %cst_80 = arith.constant 1.280000e+02 : f32
    %200 = vector.broadcast %cst_80 : f32 to vector<128x1xf32>
    %201 = arith.divf %199, %200 : vector<128x1xf32>
    %202 = arith.mulf %196, %196 : vector<128x1xf32>
    %203 = arith.subf %201, %202 : vector<128x1xf32>
    %204 = vector.broadcast %196 : vector<128x1xf32> to vector<128x128xf32>
    %205 = arith.subf %192, %204 : vector<128x128xf32>
    %cst_81 = arith.constant 9.99999974E-6 : f32
    %206 = vector.broadcast %cst_81 : f32 to vector<128x1xf32>
    %207 = arith.addf %203, %206 : vector<128x1xf32>
    %208 = math.rsqrt %207 : vector<128x1xf32>
    %209 = vector.broadcast %208 : vector<128x1xf32> to vector<128x128xf32>
    %210 = arith.mulf %205, %209 : vector<128x128xf32>
    %211 = vector.broadcast %7 : vector<1x128xf32> to vector<128x128xf32>
    %212 = arith.mulf %210, %211 : vector<128x128xf32>
    %213 = vector.broadcast %8 : vector<1x128xf32> to vector<128x128xf32>
    %214 = arith.addf %212, %213 : vector<128x128xf32>
    %215 = vector.shape_cast %214 : vector<128x128xf32> to vector<8x16x128xf32>
    %c0_82 = arith.constant 0 : index
    %c0_83 = arith.constant 0 : index
    %c0_84 = arith.constant 0 : index
    %216 = vector.load %arg10[%c0_82, %c0_83, %c0_84] : memref<8x16x128xf32, #tpu.memory_space<vmem>>, vector<8x16x128xf32>
    tpu.vector_store %arg10[%c0_82, %c0_83, %c0_84], %215 {strides = array<i32>} : memref<8x16x128xf32, #tpu.memory_space<vmem>>, vector<8x16x128xf32>,
    %c0_85 = arith.constant 0 : index
    %c0_86 = arith.constant 0 : index
    %217 = vector.load %arg12[%c0_85, %c0_86] : memref<16x128xf32, #tpu.memory_space<vmem>>, vector<16x128xf32>
    %cst_87 = arith.constant 5.000000e-01 : f32
    %cst_88 = arith.constant 1.000000e+00 : f32
    %c0_i32_89 = arith.constant 0 : i32
    %218 = arith.index_cast %c0_i32_89 : i32 to index
    %c0_90 = arith.constant 0 : index
    %c0_91 = arith.constant 0 : index
    %219 = vector.load %arg10[%218, %c0_90, %c0_91] : memref<8x16x128xf32, #tpu.memory_space<vmem>>, vector<1x16x128xf32>
    %220 = vector.shape_cast %219 : vector<1x16x128xf32> to vector<16x128xf32>
    %221 = arith.subf %220, %217 : vector<16x128xf32>
    %222 = vector.broadcast %cst_87 : f32 to vector<16x128xf32>
    %223 = arith.mulf %221, %222 : vector<16x128xf32>
    %224 = arith.addf %217, %223 : vector<16x128xf32>
    %225 = vector.broadcast %cst_88 : f32 to vector<16x128xf32>
    %226 = arith.cmpf oge, %224, %225 : vector<16x128xf32>
    %227 = arith.extui %226 : vector<16x128xi1> to vector<16x128xi32>
    %228 = arith.sitofp %227 : vector<16x128xi32> to vector<16x128xf32>
    %229 = arith.truncf %228 : vector<16x128xf32> to vector<16x128xbf16>
    %c0_92 = arith.constant 0 : index
    %230 = arith.index_cast %c0_i32_89 : i32 to index
    %c0_93 = arith.constant 0 : index
    %c0_94 = arith.constant 0 : index
    %231 = vector.load %arg7[%c0_92, %230, %c0_93, %c0_94] : memref<1x8x16x128xbf16, #tpu.memory_space<vmem>>, vector<1x1x16x128xbf16>
    %232 = vector.shape_cast %231 : vector<1x1x16x128xbf16> to vector<16x128xbf16>
    %233 = vector.shape_cast %229 : vector<16x128xbf16> to vector<1x1x16x128xbf16>
    tpu.vector_store %arg7[%c0_92, %230, %c0_93, %c0_94], %233 {strides = array<i32>} : memref<1x8x16x128xbf16, #tpu.memory_space<vmem>>, vector<1x1x16x128xbf16>,
    %cst_95 = arith.constant 0.000000e+00 : f32
    %234 = vector.broadcast %cst_95 : f32 to vector<16x128xf32>
    %235 = arith.select %226, %234, %224 : vector<16x128xi1>, vector<16x128xf32>
    %c1_i32_96 = arith.constant 1 : i32
    %236 = arith.index_cast %c1_i32_96 : i32 to index
    %c0_97 = arith.constant 0 : index
    %c0_98 = arith.constant 0 : index
    %237 = vector.load %arg10[%236, %c0_97, %c0_98] : memref<8x16x128xf32, #tpu.memory_space<vmem>>, vector<1x16x128xf32>
    %238 = vector.shape_cast %237 : vector<1x16x128xf32> to vector<16x128xf32>
    %239 = arith.subf %238, %235 : vector<16x128xf32>
    %240 = vector.broadcast %cst_87 : f32 to vector<16x128xf32>
    %241 = arith.mulf %239, %240 : vector<16x128xf32>
    %242 = arith.addf %235, %241 : vector<16x128xf32>
    %243 = vector.broadcast %cst_88 : f32 to vector<16x128xf32>
    %244 = arith.cmpf oge, %242, %243 : vector<16x128xf32>
    %245 = arith.extui %244 : vector<16x128xi1> to vector<16x128xi32>
    %246 = arith.sitofp %245 : vector<16x128xi32> to vector<16x128xf32>
    %247 = arith.truncf %246 : vector<16x128xf32> to vector<16x128xbf16>
    %c0_99 = arith.constant 0 : index
    %248 = arith.index_cast %c1_i32_96 : i32 to index
    %c0_100 = arith.constant 0 : index
    %c0_101 = arith.constant 0 : index
    %249 = vector.load %arg7[%c0_99, %248, %c0_100, %c0_101] : memref<1x8x16x128xbf16, #tpu.memory_space<vmem>>, vector<1x1x16x128xbf16>
    %250 = vector.shape_cast %249 : vector<1x1x16x128xbf16> to vector<16x128xbf16>
    %251 = vector.shape_cast %247 : vector<16x128xbf16> to vector<1x1x16x128xbf16>
    tpu.vector_store %arg7[%c0_99, %248, %c0_100, %c0_101], %251 {strides = array<i32>} : memref<1x8x16x128xbf16, #tpu.memory_space<vmem>>, vector<1x1x16x128xbf16>,
    %cst_102 = arith.constant 0.000000e+00 : f32
    %252 = vector.broadcast %cst_102 : f32 to vector<16x128xf32>
    %253 = arith.select %244, %252, %242 : vector<16x128xi1>, vector<16x128xf32>
    %c2_i32_103 = arith.constant 2 : i32
    %254 = arith.index_cast %c2_i32_103 : i32 to index
    %c0_104 = arith.constant 0 : index
    %c0_105 = arith.constant 0 : index
    %255 = vector.load %arg10[%254, %c0_104, %c0_105] : memref<8x16x128xf32, #tpu.memory_space<vmem>>, vector<1x16x128xf32>
    %256 = vector.shape_cast %255 : vector<1x16x128xf32> to vector<16x128xf32>
    %257 = arith.subf %256, %253 : vector<16x128xf32>
    %258 = vector.broadcast %cst_87 : f32 to vector<16x128xf32>
    %259 = arith.mulf %257, %258 : vector<16x128xf32>
    %260 = arith.addf %253, %259 : vector<16x128xf32>
    %261 = vector.broadcast %cst_88 : f32 to vector<16x128xf32>
    %262 = arith.cmpf oge, %260, %261 : vector<16x128xf32>
    %263 = arith.extui %262 : vector<16x128xi1> to vector<16x128xi32>
    %264 = arith.sitofp %263 : vector<16x128xi32> to vector<16x128xf32>
    %265 = arith.truncf %264 : vector<16x128xf32> to vector<16x128xbf16>
    %c0_106 = arith.constant 0 : index
    %266 = arith.index_cast %c2_i32_103 : i32 to index
    %c0_107 = arith.constant 0 : index
    %c0_108 = arith.constant 0 : index
    %267 = vector.load %arg7[%c0_106, %266, %c0_107, %c0_108] : memref<1x8x16x128xbf16, #tpu.memory_space<vmem>>, vector<1x1x16x128xbf16>
    %268 = vector.shape_cast %267 : vector<1x1x16x128xbf16> to vector<16x128xbf16>
    %269 = vector.shape_cast %265 : vector<16x128xbf16> to vector<1x1x16x128xbf16>
    tpu.vector_store %arg7[%c0_106, %266, %c0_107, %c0_108], %269 {strides = array<i32>} : memref<1x8x16x128xbf16, #tpu.memory_space<vmem>>, vector<1x1x16x128xbf16>,
    %cst_109 = arith.constant 0.000000e+00 : f32
    %270 = vector.broadcast %cst_109 : f32 to vector<16x128xf32>
    %271 = arith.select %262, %270, %260 : vector<16x128xi1>, vector<16x128xf32>
    %c3_i32_110 = arith.constant 3 : i32
    %272 = arith.index_cast %c3_i32_110 : i32 to index
    %c0_111 = arith.constant 0 : index
    %c0_112 = arith.constant 0 : index
    %273 = vector.load %arg10[%272, %c0_111, %c0_112] : memref<8x16x128xf32, #tpu.memory_space<vmem>>, vector<1x16x128xf32>
    %274 = vector.shape_cast %273 : vector<1x16x128xf32> to vector<16x128xf32>
    %275 = arith.subf %274, %271 : vector<16x128xf32>
    %276 = vector.broadcast %cst_87 : f32 to vector<16x128xf32>
    %277 = arith.mulf %275, %276 : vector<16x128xf32>
    %278 = arith.addf %271, %277 : vector<16x128xf32>
    %279 = vector.broadcast %cst_88 : f32 to vector<16x128xf32>
    %280 = arith.cmpf oge, %278, %279 : vector<16x128xf32>
    %281 = arith.extui %280 : vector<16x128xi1> to vector<16x128xi32>
    %282 = arith.sitofp %281 : vector<16x128xi32> to vector<16x128xf32>
    %283 = arith.truncf %282 : vector<16x128xf32> to vector<16x128xbf16>
    %c0_113 = arith.constant 0 : index
    %284 = arith.index_cast %c3_i32_110 : i32 to index
    %c0_114 = arith.constant 0 : index
    %c0_115 = arith.constant 0 : index
    %285 = vector.load %arg7[%c0_113, %284, %c0_114, %c0_115] : memref<1x8x16x128xbf16, #tpu.memory_space<vmem>>, vector<1x1x16x128xbf16>
    %286 = vector.shape_cast %285 : vector<1x1x16x128xbf16> to vector<16x128xbf16>
    %287 = vector.shape_cast %283 : vector<16x128xbf16> to vector<1x1x16x128xbf16>
    tpu.vector_store %arg7[%c0_113, %284, %c0_114, %c0_115], %287 {strides = array<i32>} : memref<1x8x16x128xbf16, #tpu.memory_space<vmem>>, vector<1x1x16x128xbf16>,
    %cst_116 = arith.constant 0.000000e+00 : f32
    %288 = vector.broadcast %cst_116 : f32 to vector<16x128xf32>
    %289 = arith.select %280, %288, %278 : vector<16x128xi1>, vector<16x128xf32>
    %c4_i32_117 = arith.constant 4 : i32
    %290 = arith.index_cast %c4_i32_117 : i32 to index
    %c0_118 = arith.constant 0 : index
    %c0_119 = arith.constant 0 : index
    %291 = vector.load %arg10[%290, %c0_118, %c0_119] : memref<8x16x128xf32, #tpu.memory_space<vmem>>, vector<1x16x128xf32>
    %292 = vector.shape_cast %291 : vector<1x16x128xf32> to vector<16x128xf32>
    %293 = arith.subf %292, %289 : vector<16x128xf32>
    %294 = vector.broadcast %cst_87 : f32 to vector<16x128xf32>
    %295 = arith.mulf %293, %294 : vector<16x128xf32>
    %296 = arith.addf %289, %295 : vector<16x128xf32>
    %297 = vector.broadcast %cst_88 : f32 to vector<16x128xf32>
    %298 = arith.cmpf oge, %296, %297 : vector<16x128xf32>
    %299 = arith.extui %298 : vector<16x128xi1> to vector<16x128xi32>
    %300 = arith.sitofp %299 : vector<16x128xi32> to vector<16x128xf32>
    %301 = arith.truncf %300 : vector<16x128xf32> to vector<16x128xbf16>
    %c0_120 = arith.constant 0 : index
    %302 = arith.index_cast %c4_i32_117 : i32 to index
    %c0_121 = arith.constant 0 : index
    %c0_122 = arith.constant 0 : index
    %303 = vector.load %arg7[%c0_120, %302, %c0_121, %c0_122] : memref<1x8x16x128xbf16, #tpu.memory_space<vmem>>, vector<1x1x16x128xbf16>
    %304 = vector.shape_cast %303 : vector<1x1x16x128xbf16> to vector<16x128xbf16>
    %305 = vector.shape_cast %301 : vector<16x128xbf16> to vector<1x1x16x128xbf16>
    tpu.vector_store %arg7[%c0_120, %302, %c0_121, %c0_122], %305 {strides = array<i32>} : memref<1x8x16x128xbf16, #tpu.memory_space<vmem>>, vector<1x1x16x128xbf16>,
    %cst_123 = arith.constant 0.000000e+00 : f32
    %306 = vector.broadcast %cst_123 : f32 to vector<16x128xf32>
    %307 = arith.select %298, %306, %296 : vector<16x128xi1>, vector<16x128xf32>
    %c5_i32_124 = arith.constant 5 : i32
    %308 = arith.index_cast %c5_i32_124 : i32 to index
    %c0_125 = arith.constant 0 : index
    %c0_126 = arith.constant 0 : index
    %309 = vector.load %arg10[%308, %c0_125, %c0_126] : memref<8x16x128xf32, #tpu.memory_space<vmem>>, vector<1x16x128xf32>
    %310 = vector.shape_cast %309 : vector<1x16x128xf32> to vector<16x128xf32>
    %311 = arith.subf %310, %307 : vector<16x128xf32>
    %312 = vector.broadcast %cst_87 : f32 to vector<16x128xf32>
    %313 = arith.mulf %311, %312 : vector<16x128xf32>
    %314 = arith.addf %307, %313 : vector<16x128xf32>
    %315 = vector.broadcast %cst_88 : f32 to vector<16x128xf32>
    %316 = arith.cmpf oge, %314, %315 : vector<16x128xf32>
    %317 = arith.extui %316 : vector<16x128xi1> to vector<16x128xi32>
    %318 = arith.sitofp %317 : vector<16x128xi32> to vector<16x128xf32>
    %319 = arith.truncf %318 : vector<16x128xf32> to vector<16x128xbf16>
    %c0_127 = arith.constant 0 : index
    %320 = arith.index_cast %c5_i32_124 : i32 to index
    %c0_128 = arith.constant 0 : index
    %c0_129 = arith.constant 0 : index
    %321 = vector.load %arg7[%c0_127, %320, %c0_128, %c0_129] : memref<1x8x16x128xbf16, #tpu.memory_space<vmem>>, vector<1x1x16x128xbf16>
    %322 = vector.shape_cast %321 : vector<1x1x16x128xbf16> to vector<16x128xbf16>
    %323 = vector.shape_cast %319 : vector<16x128xbf16> to vector<1x1x16x128xbf16>
    tpu.vector_store %arg7[%c0_127, %320, %c0_128, %c0_129], %323 {strides = array<i32>} : memref<1x8x16x128xbf16, #tpu.memory_space<vmem>>, vector<1x1x16x128xbf16>,
    %cst_130 = arith.constant 0.000000e+00 : f32
    %324 = vector.broadcast %cst_130 : f32 to vector<16x128xf32>
    %325 = arith.select %316, %324, %314 : vector<16x128xi1>, vector<16x128xf32>
    %c6_i32_131 = arith.constant 6 : i32
    %326 = arith.index_cast %c6_i32_131 : i32 to index
    %c0_132 = arith.constant 0 : index
    %c0_133 = arith.constant 0 : index
    %327 = vector.load %arg10[%326, %c0_132, %c0_133] : memref<8x16x128xf32, #tpu.memory_space<vmem>>, vector<1x16x128xf32>
    %328 = vector.shape_cast %327 : vector<1x16x128xf32> to vector<16x128xf32>
    %329 = arith.subf %328, %325 : vector<16x128xf32>
    %330 = vector.broadcast %cst_87 : f32 to vector<16x128xf32>
    %331 = arith.mulf %329, %330 : vector<16x128xf32>
    %332 = arith.addf %325, %331 : vector<16x128xf32>
    %333 = vector.broadcast %cst_88 : f32 to vector<16x128xf32>
    %334 = arith.cmpf oge, %332, %333 : vector<16x128xf32>
    %335 = arith.extui %334 : vector<16x128xi1> to vector<16x128xi32>
    %336 = arith.sitofp %335 : vector<16x128xi32> to vector<16x128xf32>
    %337 = arith.truncf %336 : vector<16x128xf32> to vector<16x128xbf16>
    %c0_134 = arith.constant 0 : index
    %338 = arith.index_cast %c6_i32_131 : i32 to index
    %c0_135 = arith.constant 0 : index
    %c0_136 = arith.constant 0 : index
    %339 = vector.load %arg7[%c0_134, %338, %c0_135, %c0_136] : memref<1x8x16x128xbf16, #tpu.memory_space<vmem>>, vector<1x1x16x128xbf16>
    %340 = vector.shape_cast %339 : vector<1x1x16x128xbf16> to vector<16x128xbf16>
    %341 = vector.shape_cast %337 : vector<16x128xbf16> to vector<1x1x16x128xbf16>
    tpu.vector_store %arg7[%c0_134, %338, %c0_135, %c0_136], %341 {strides = array<i32>} : memref<1x8x16x128xbf16, #tpu.memory_space<vmem>>, vector<1x1x16x128xbf16>,
    %cst_137 = arith.constant 0.000000e+00 : f32
    %342 = vector.broadcast %cst_137 : f32 to vector<16x128xf32>
    %343 = arith.select %334, %342, %332 : vector<16x128xi1>, vector<16x128xf32>
    %c7_i32_138 = arith.constant 7 : i32
    %344 = arith.index_cast %c7_i32_138 : i32 to index
    %c0_139 = arith.constant 0 : index
    %c0_140 = arith.constant 0 : index
    %345 = vector.load %arg10[%344, %c0_139, %c0_140] : memref<8x16x128xf32, #tpu.memory_space<vmem>>, vector<1x16x128xf32>
    %346 = vector.shape_cast %345 : vector<1x16x128xf32> to vector<16x128xf32>
    %347 = arith.subf %346, %343 : vector<16x128xf32>
    %348 = vector.broadcast %cst_87 : f32 to vector<16x128xf32>
    %349 = arith.mulf %347, %348 : vector<16x128xf32>
    %350 = arith.addf %343, %349 : vector<16x128xf32>
    %351 = vector.broadcast %cst_88 : f32 to vector<16x128xf32>
    %352 = arith.cmpf oge, %350, %351 : vector<16x128xf32>
    %353 = arith.extui %352 : vector<16x128xi1> to vector<16x128xi32>
    %354 = arith.sitofp %353 : vector<16x128xi32> to vector<16x128xf32>
    %355 = arith.truncf %354 : vector<16x128xf32> to vector<16x128xbf16>
    %c0_141 = arith.constant 0 : index
    %356 = arith.index_cast %c7_i32_138 : i32 to index
    %c0_142 = arith.constant 0 : index
    %c0_143 = arith.constant 0 : index
    %357 = vector.load %arg7[%c0_141, %356, %c0_142, %c0_143] : memref<1x8x16x128xbf16, #tpu.memory_space<vmem>>, vector<1x1x16x128xbf16>
    %358 = vector.shape_cast %357 : vector<1x1x16x128xbf16> to vector<16x128xbf16>
    %359 = vector.shape_cast %355 : vector<16x128xbf16> to vector<1x1x16x128xbf16>
    tpu.vector_store %arg7[%c0_141, %356, %c0_142, %c0_143], %359 {strides = array<i32>} : memref<1x8x16x128xbf16, #tpu.memory_space<vmem>>, vector<1x1x16x128xbf16>,
    %cst_144 = arith.constant 0.000000e+00 : f32
    %360 = vector.broadcast %cst_144 : f32 to vector<16x128xf32>
    %361 = arith.select %352, %360, %350 : vector<16x128xi1>, vector<16x128xf32>
    %c8_i32_145 = arith.constant 8 : i32
    %c0_146 = arith.constant 0 : index
    %c0_147 = arith.constant 0 : index
    %362 = vector.load %arg12[%c0_146, %c0_147] : memref<16x128xf32, #tpu.memory_space<vmem>>, vector<16x128xf32>
    tpu.vector_store %arg12[%c0_146, %c0_147], %361 {strides = array<i32>} : memref<16x128xf32, #tpu.memory_space<vmem>>, vector<16x128xf32>,
    return
  }
  func.func @transform_0(%arg0: i32, %arg1: i32) -> (i32, i32, i32, i32) {
    %c0_i32 = arith.constant 0 : i32
    %c0_i32_0 = arith.constant 0 : i32
    %c0_i32_1 = arith.constant 0 : i32
    return %arg0, %arg1, %c0_i32, %c0_i32_0 : i32, i32, i32, i32
  }
  func.func @transform_1(%arg0: i32, %arg1: i32) -> (i32, i32) {
    %c0_i32 = arith.constant 0 : i32
    %c0_i32_0 = arith.constant 0 : i32
    %c0_i32_1 = arith.constant 0 : i32
    return %c0_i32, %c0_i32_0 : i32, i32
  }
  func.func @transform_2(%arg0: i32, %arg1: i32) -> (i32, i32) {
    %c0_i32 = arith.constant 0 : i32
    %c0_i32_0 = arith.constant 0 : i32
    %c0_i32_1 = arith.constant 0 : i32
    return %c0_i32, %c0_i32_0 : i32, i32
  }
  func.func @transform_3(%arg0: i32, %arg1: i32) -> (i32, i32) {
    %c0_i32 = arith.constant 0 : i32
    %c0_i32_0 = arith.constant 0 : i32
    %c0_i32_1 = arith.constant 0 : i32
    return %c0_i32, %c0_i32_0 : i32, i32
  }
  func.func @transform_4(%arg0: i32, %arg1: i32) -> (i32, i32) {
    %c0_i32 = arith.constant 0 : i32
    %c0_i32_0 = arith.constant 0 : i32
    %c0_i32_1 = arith.constant 0 : i32
    return %c0_i32, %c0_i32_0 : i32, i32
  }
  func.func @transform_5(%arg0: i32, %arg1: i32) -> (i32, i32, i32, i32) {
    %c0_i32 = arith.constant 0 : i32
    %c0_i32_0 = arith.constant 0 : i32
    %c0_i32_1 = arith.constant 0 : i32
    return %arg0, %arg1, %c0_i32, %c0_i32_0 : i32, i32, i32, i32
  }
}

</mosaic_0001>

<llo_original>
// kernel: tpu_custom_call.1
$region0: #{tpu_custom_call.1}
  #allocation0 [shape = 'u32[]', space=smem, size = 0x4, offset = 0x4, fixed_abs, tag = 'smem constant byte address 0x4 - core index']
  #allocation1 [shape = 'u32[72,128]{1,0:T(1,128)}', space=vmem, size = 0x9000, scoped, tag = 'internal scratch']
  #allocation2 [shape = 'f32[8,16,256]{2,1,0:T(8,128)}', space=vmem, size = 0x20000, scoped, tag = 'scratch operand']
  #allocation3 [shape = 'bf16[8,16,256]{2,1,0:T(8,128)(2,1)}', space=vmem, size = 0x10000, scoped, tag = 'scratch operand']
  #allocation4 [shape = 'f32[8,16,128]{2,1,0:T(8,128)}', space=vmem, size = 0x10000, scoped, tag = 'scratch operand']
  #allocation5 [shape = 'f32[16,256]{1,0:T(8,128)}', space=vmem, size = 0x4000, scoped, tag = 'scratch operand']
  #allocation6 [shape = 'f32[16,128]{1,0:T(8,128)}', space=vmem, size = 0x2000, scoped, tag = 'scratch operand']
  %s0 = inlined_call_operand.hbm [shape: f32[2,8,16,128], index: 0, kind: input, shape index: {}]
  %s1 = inlined_call_operand.hbm [shape: bf16[128,256], index: 1, kind: input, shape index: {}]
  %s2 = inlined_call_operand.hbm [shape: bf16[256,128], index: 2, kind: input, shape index: {}]
  %s3 = inlined_call_operand.hbm [shape: f32[3,256], index: 3, kind: input, shape index: {}]
  %s4 = inlined_call_operand.hbm [shape: f32[3,128], index: 4, kind: input, shape index: {}]
  %s5 = inlined_call_operand.hbm [shape: bf16[2,8,16,128], index: 5, kind: output, shape index: {}]
  %s6 = sld [smem:[#allocation0]]
  $region77: #{tpu_custom_call.1} parent=0
    _
  %s8 = ssub.s32 1, %s6
  %s9 = scalar_select 0, %s8, %s6
  $region1: #{tpu_custom_call.1} parent=0
    #allocation7 [shape = 'u8[131072]{0}', space=vmem, size = 0x20000, scoped, tag = 'input window, operand 0']
    #allocation8 [shape = 's32[2]{0}', space=sflag, size = 0x8, scoped, tag = 'scoped memory for tpu_custom_call.1']
    #allocation9 [shape = 's32[2]{0}', space=sflag, size = 0x8, scoped, tag = 'scoped memory for tpu_custom_call.1']
    #allocation10 [shape = 'u8[65536]{0}', space=vmem, size = 0x10000, scoped, tag = 'input window, operand 1, single buffered']
    #allocation11 [shape = 's32[1]{0}', space=sflag, size = 0x4, scoped, tag = 'scoped memory for tpu_custom_call.1']
    #allocation12 [shape = 'u8[65536]{0}', space=vmem, size = 0x10000, scoped, tag = 'input window, operand 2, single buffered']
    #allocation13 [shape = 'u8[4096]{0}', space=vmem, size = 0x1000, scoped, tag = 'input window, operand 3, single buffered']
    #allocation14 [shape = 's32[1]{0}', space=sflag, size = 0x4, scoped, tag = 'scoped memory for tpu_custom_call.1']
    #allocation15 [shape = 'u8[2048]{0}', space=vmem, size = 0x800, scoped, tag = 'input window, operand 4, single buffered']
    #allocation16 [shape = 'u8[65536]{0}', space=vmem, size = 0x10000, scoped, tag = 'output window, operand 0']
    %10 = vsyncpa [#allocation8], 0
    %s11 = scalar_lea.sflag [#allocation8], 1
    %12 = vsyncpa %s11, 0
    %13 = vsyncpa [#allocation11], 0
    %14 = vsyncpa [#allocation14], 0
    %15 = vsyncpa [#allocation9], 0
    %s16 = scalar_lea.sflag [#allocation9], 1
    %17 = vsyncpa %s16, 0
    loop: start=0, step=1, limit=4
    $region2: #{tpu_custom_call.1} parent=1 // loop_pre_header
      _
    $region3: #{tpu_custom_call.1} parent=1 // loop_header
      %s19 = sphi 0, %s23
      %p20 = scmp.ge.s32.totalorder %s19, 4
      %s26 = sphi 0, %s38
      %s27 = sphi 0, %s34
      %s28 = sphi 0, %s26
      %s29 = sphi 0, %s27
      %s30 = sphi 0, %s28
      %s31 = sphi 0, %s29
      %s43 = sphi 0, %s45
      %s46 = sphi 0, %s43
      %s47 = sphi 0, %s46
      %s63 = sphi 0, %s47
      %s67 = sphi 0, %s67
      %s69 = sphi 0, %s67
      %s70 = sphi 0, %s69
      %s84 = sphi 0, %s70
      %s88 = sphi 0, %s88
      %s90 = sphi 0, %s88
      %s91 = sphi 0, %s90
      %s105 = sphi 0, %s91
      %s109 = sphi 0, %s109
      %s111 = sphi 0, %s109
      %s112 = sphi 0, %s111
      %s126 = sphi 0, %s112
      %s130 = sphi 0, %s130
      %s132 = sphi 0, %s130
      %s133 = sphi 0, %s132
      %s147 = sphi 0, %s133
      %s155 = sphi 0, %s157
      %s158 = sphi 0, %s155
      %s159 = sphi 0, %s158
      %s175 = sphi 0, %s159
    $region4: #{tpu_custom_call.1} parent=1 // loop_header_branch
      %22 = sbr.rel (%p20) target = $region8
    $region5: #{tpu_custom_call.1} parent=1 // loop_body
      %s24 = ssub.s32 %s19, 1
      %s25 = ssub.s32 %s19, 2
      %s32 = sadd.s32 1, %s27
      %p33 = scmp.ge.s32.totalorder %s32, 1
      %s34 = scalar_select %p33, 0, %s32
      %s35 = sadd.s32 1, %s26
      %s36 = scalar_select %p33, %s35, %s26
      %p37 = scmp.ge.s32.totalorder %s36, 2
      %s38 = scalar_select %p37, 0, %s36
      %s39 = ssub.s32 %s26, %s38
      %s40 = ssub.s32 %s27, %s34
      %s41 = sor.u32 %s39, %s40
      %p42 = scmp.eq.s32.totalorder %s41, 0
      %s44 = sadd.s32 %s43, 1
      %s45 = scalar_select %p42, %s43, %s44
      %p48 = pneg %p42
      %p49 = scmp.eq.s32.totalorder %s19, 1
      %p50 = por %p48, %p49
      %p51 = scmp.ne.s32.totalorder %s43, %s46
      %p52 = scmp.eq.s32.totalorder %s19, 0
      %p53 = por %p51, %p52
      %p54 = scmp.ne.s32.totalorder %s43, %s46
      %p55 = scmp.eq.s32.totalorder %s24, 1
      %p56 = por %p54, %p55
      %p57 = scmp.ne.s32.totalorder %s46, %s47
      %p58 = scmp.eq.s32.totalorder %s24, 0
      %p59 = por %p57, %p58
      %p60 = scmp.ne.s32.totalorder %s46, %s47
      %p61 = scmp.eq.s32.totalorder %s25, 1
      %p62 = por %p60, %p61
      %p64 = scmp.ne.s32.totalorder %s47, %s63
      %p65 = scmp.eq.s32.totalorder %s25, 0
      %p66 = por %p64, %p65
      %s68 = sadd.s32 %s67, 1
      %p71 = scmp.eq.s32.totalorder %s19, 1
      %p72 = scmp.ne.s32.totalorder %s67, %s69
      %p73 = scmp.eq.s32.totalorder %s19, 0
      %p74 = por %p72, %p73
      %p75 = scmp.ne.s32.totalorder %s67, %s69
      %p76 = scmp.eq.s32.totalorder %s24, 1
      %p77 = por %p75, %p76
      %p78 = scmp.ne.s32.totalorder %s69, %s70
      %p79 = scmp.eq.s32.totalorder %s24, 0
      %p80 = por %p78, %p79
      %p81 = scmp.ne.s32.totalorder %s69, %s70
      %p82 = scmp.eq.s32.totalorder %s25, 1
      %p83 = por %p81, %p82
      %p85 = scmp.ne.s32.totalorder %s70, %s84
      %p86 = scmp.eq.s32.totalorder %s25, 0
      %p87 = por %p85, %p86
      %s89 = sadd.s32 %s88, 1
      %p92 = scmp.eq.s32.totalorder %s19, 1
      %p93 = scmp.ne.s32.totalorder %s88, %s90
      %p94 = scmp.eq.s32.totalorder %s19, 0
      %p95 = por %p93, %p94
      %p96 = scmp.ne.s32.totalorder %s88, %s90
      %p97 = scmp.eq.s32.totalorder %s24, 1
      %p98 = por %p96, %p97
      %p99 = scmp.ne.s32.totalorder %s90, %s91
      %p100 = scmp.eq.s32.totalorder %s24, 0
      %p101 = por %p99, %p100
      %p102 = scmp.ne.s32.totalorder %s90, %s91
      %p103 = scmp.eq.s32.totalorder %s25, 1
      %p104 = por %p102, %p103
      %p106 = scmp.ne.s32.totalorder %s91, %s105
      %p107 = scmp.eq.s32.totalorder %s25, 0
      %p108 = por %p106, %p107
      %s110 = sadd.s32 %s109, 1
      %p113 = scmp.eq.s32.totalorder %s19, 1
      %p114 = scmp.ne.s32.totalorder %s109, %s111
      %p115 = scmp.eq.s32.totalorder %s19, 0
      %p116 = por %p114, %p115
      %p117 = scmp.ne.s32.totalorder %s109, %s111
      %p118 = scmp.eq.s32.totalorder %s24, 1
      %p119 = por %p117, %p118
      %p120 = scmp.ne.s32.totalorder %s111, %s112
      %p121 = scmp.eq.s32.totalorder %s24, 0
      %p122 = por %p120, %p121
      %p123 = scmp.ne.s32.totalorder %s111, %s112
      %p124 = scmp.eq.s32.totalorder %s25, 1
      %p125 = por %p123, %p124
      %p127 = scmp.ne.s32.totalorder %s112, %s126
      %p128 = scmp.eq.s32.totalorder %s25, 0
      %p129 = por %p127, %p128
      %s131 = sadd.s32 %s130, 1
      %p134 = scmp.eq.s32.totalorder %s19, 1
      %p135 = scmp.ne.s32.totalorder %s130, %s132
      %p136 = scmp.eq.s32.totalorder %s19, 0
      %p137 = por %p135, %p136
      %p138 = scmp.ne.s32.totalorder %s130, %s132
      %p139 = scmp.eq.s32.totalorder %s24, 1
      %p140 = por %p138, %p139
      %p141 = scmp.ne.s32.totalorder %s132, %s133
      %p142 = scmp.eq.s32.totalorder %s24, 0
      %p143 = por %p141, %p142
      %p144 = scmp.ne.s32.totalorder %s132, %s133
      %p145 = scmp.eq.s32.totalorder %s25, 1
      %p146 = por %p144, %p145
      %p148 = scmp.ne.s32.totalorder %s133, %s147
      %p149 = scmp.eq.s32.totalorder %s25, 0
      %p150 = por %p148, %p149
      %s151 = ssub.s32 %s26, %s38
      %s152 = ssub.s32 %s27, %s34
      %s153 = sor.u32 %s151, %s152
      %p154 = scmp.eq.s32.totalorder %s153, 0
      %s156 = sadd.s32 %s155, 1
      %s157 = scalar_select %p154, %s155, %s156
      %p160 = pneg %p154
      %p161 = scmp.eq.s32.totalorder %s19, 1
      %p162 = por %p160, %p161
      %p163 = scmp.ne.s32.totalorder %s155, %s158
      %p164 = scmp.eq.s32.totalorder %s19, 0
      %p165 = por %p163, %p164
      %p166 = scmp.ne.s32.totalorder %s155, %s158
      %p167 = scmp.eq.s32.totalorder %s24, 1
      %p168 = por %p166, %p167
      %p169 = scmp.ne.s32.totalorder %s158, %s159
      %p170 = scmp.eq.s32.totalorder %s24, 0
      %p171 = por %p169, %p170
      %p172 = scmp.ne.s32.totalorder %s158, %s159
      %p173 = scmp.eq.s32.totalorder %s25, 1
      %p174 = por %p172, %p173
      %p176 = scmp.ne.s32.totalorder %s159, %s175
      %p177 = scmp.eq.s32.totalorder %s25, 0
      %p178 = por %p176, %p177
      %p179 = scmp.le.s32.totalorder 1, %s19
      %p180 = scmp.lt.s32.totalorder %s19, 3
      %p181 = pnand %p179, %p180
      %p182 = pneg %p181
      // Predicated region
      $region9: #{tpu_custom_call.1} parent=5 // pred_check
        _
      $region10: #{tpu_custom_call.1} parent=5 // pred_check_branch
        %184 = sbr.rel (%p181) target = $region12
      $region11: #{tpu_custom_call.1} parent=5 // pred_region
        %s185 = ssub.s32 %s19, 1
        // Predicated region
        $region13: #{tpu_custom_call.1} parent=11 // pred_check
          %p186 = pneg %p80
        $region14: #{tpu_custom_call.1} parent=11 // pred_check_branch
          %188 = sbr.rel (%p186) target = $region16
        $region15: #{tpu_custom_call.1} parent=11 // pred_region
          %190 = vsyncadd [#allocation11], 0
          %s191 = sshll.u32 %s1, 4
          %s192 = int_to_ptr.hbm [resolvable:$true] %s191
          %s193 = sshll.u32 [#allocation10], 4
          %s194 = int_to_ptr.vmem [resolvable:$true] %s193
          %199 = dma.hbm_to_vmem [thread:$0]  %s192, 2048, %s194, [#allocation11], 128, 128, 8
        $region16: #{tpu_custom_call.1} parent=11 // pred_fallthru
          _
        // Predicated region
        $region17: #{tpu_custom_call.1} parent=11 // pred_check
          %p200 = pneg %p101
        $region18: #{tpu_custom_call.1} parent=11 // pred_check_branch
          %202 = sbr.rel (%p200) target = $region20
        $region19: #{tpu_custom_call.1} parent=11 // pred_region
          %204 = vsyncadd [#allocation11], 0
          %s205 = sshll.u32 %s2, 4
          %s206 = int_to_ptr.hbm [resolvable:$true] %s205
          %s207 = sshll.u32 [#allocation12], 4
          %s208 = int_to_ptr.vmem [resolvable:$true] %s207
          %213 = dma.hbm_to_vmem [thread:$0]  %s206, 2048, %s208, [#allocation11], 64, 64, 4
        $region20: #{tpu_custom_call.1} parent=11 // pred_fallthru
          _
        // Predicated region
        $region21: #{tpu_custom_call.1} parent=11 // pred_check
          %p214 = pneg %p122
        $region22: #{tpu_custom_call.1} parent=11 // pred_check_branch
          %216 = sbr.rel (%p214) target = $region24
        $region23: #{tpu_custom_call.1} parent=11 // pred_region
          %218 = vsyncadd [#allocation14], 0
          %s220 = sshll.u32 %s3, 4
          %s221 = int_to_ptr.hbm [resolvable:$true] %s220
          %s222 = sshll.u32 [#allocation13], 4
          %s223 = int_to_ptr.vmem [resolvable:$true] %s222
          %225 = dma.hbm_to_vmem [thread:$0]  %s221, 128, %s223, [#allocation14]
        $region24: #{tpu_custom_call.1} parent=11 // pred_fallthru
          _
        // Predicated region
        $region25: #{tpu_custom_call.1} parent=11 // pred_check
          %p226 = pneg %p143
        $region26: #{tpu_custom_call.1} parent=11 // pred_check_branch
          %228 = sbr.rel (%p226) target = $region28
        $region27: #{tpu_custom_call.1} parent=11 // pred_region
          %230 = vsyncadd [#allocation14], 0
          %s232 = sshll.u32 %s4, 4
          %s233 = int_to_ptr.hbm [resolvable:$true] %s232
          %s234 = sshll.u32 [#allocation15], 4
          %s235 = int_to_ptr.vmem [resolvable:$true] %s234
          %237 = dma.hbm_to_vmem [thread:$0]  %s233, 64, %s235, [#allocation14]
        $region28: #{tpu_custom_call.1} parent=11 // pred_fallthru
          _
      $region12: #{tpu_custom_call.1} parent=5 // pred_fallthru
        _
      %p238 = scmp.lt.s32.totalorder %s19, 2
      // Predicated region
      $region29: #{tpu_custom_call.1} parent=5 // pred_check
        %p239 = pneg %p238
      $region30: #{tpu_custom_call.1} parent=5 // pred_check_branch
        %241 = sbr.rel (%p239) target = $region32
      $region31: #{tpu_custom_call.1} parent=5 // pred_region
        // Predicated region
        $region33: #{tpu_custom_call.1} parent=31 // pred_check
          %p242 = pneg %p53
        $region34: #{tpu_custom_call.1} parent=31 // pred_check_branch
          %244 = sbr.rel (%p242) target = $region36
        $region35: #{tpu_custom_call.1} parent=31 // pred_region
          %s245 = sand.u32 %s43, 1
          %s246 = scalar_lea.sflag [#allocation8], %s245
          %s247 = sand.u32 %s43, 1
          %s248 = smul.addr %s247, 128
          %s249 = scalar_lea.vmem [#allocation7], %s248
          %s250 = smul.u32 8, %s27
          %252 = vsyncadd %s246, 0
          %s253 = smul.addr %s250, 2
          %s254 = smul.addr %s26, 16
          %s255 = sadd.s32 %s253, %s254
          %s256 = smul.addr %s255, 8
          %s257 = scalar_lea.hbm %s0, %s256
          %s258 = sshll.u32 %s257, 4
          %s259 = int_to_ptr.hbm [resolvable:$true] %s258
          %s260 = sshll.u32 %s249, 4
          %s261 = int_to_ptr.vmem [resolvable:$true] %s260
          %266 = dma.hbm_to_vmem [thread:$0]  %s259, 2048, %s261, %s246, 128, 128, 8
        $region36: #{tpu_custom_call.1} parent=31 // pred_fallthru
          _
      $region32: #{tpu_custom_call.1} parent=5 // pred_fallthru
        _
      %p267 = scmp.le.s32.totalorder 1, %s19
      %p268 = scmp.lt.s32.totalorder %s19, 3
      %p269 = pnand %p267, %p268
      %p270 = pneg %p269
      // Predicated region
      $region37: #{tpu_custom_call.1} parent=5 // pred_check
        _
      $region38: #{tpu_custom_call.1} parent=5 // pred_check_branch
        %272 = sbr.rel (%p269) target = $region40
      $region39: #{tpu_custom_call.1} parent=5 // pred_region
        %s273 = ssub.s32 %s19, 1
        %s274 = sand.u32 %s46, 1
        %s275 = scalar_lea.sflag [#allocation8], %s274
        %s276 = sand.u32 %s46, 1
        %s277 = smul.addr %s276, 128
        %s278 = scalar_lea.vmem [#allocation7], %s277
        // Predicated region
        $region41: #{tpu_custom_call.1} parent=39 // pred_check
          %p279 = pneg %p59
        $region42: #{tpu_custom_call.1} parent=39 // pred_check_branch
          %281 = sbr.rel (%p279) target = $region44
        $region43: #{tpu_custom_call.1} parent=39 // pred_region
          %283 = dma.done %s275, 2048
        $region44: #{tpu_custom_call.1} parent=39 // pred_fallthru
          _
        // Predicated region
        $region45: #{tpu_custom_call.1} parent=39 // pred_check
          %p284 = pneg %p80
        $region46: #{tpu_custom_call.1} parent=39 // pred_check_branch
          %286 = sbr.rel (%p284) target = $region48
        $region47: #{tpu_custom_call.1} parent=39 // pred_region
          %288 = dma.done [#allocation11], 2048
        $region48: #{tpu_custom_call.1} parent=39 // pred_fallthru
          _
        // Predicated region
        $region49: #{tpu_custom_call.1} parent=39 // pred_check
          %p289 = pneg %p101
        $region50: #{tpu_custom_call.1} parent=39 // pred_check_branch
          %291 = sbr.rel (%p289) target = $region52
        $region51: #{tpu_custom_call.1} parent=39 // pred_region
          %293 = dma.done [#allocation11], 2048
        $region52: #{tpu_custom_call.1} parent=39 // pred_fallthru
          _
        // Predicated region
        $region53: #{tpu_custom_call.1} parent=39 // pred_check
          %p294 = pneg %p122
        $region54: #{tpu_custom_call.1} parent=39 // pred_check_branch
          %296 = sbr.rel (%p294) target = $region56
        $region55: #{tpu_custom_call.1} parent=39 // pred_region
          %298 = dma.done [#allocation14], 128
        $region56: #{tpu_custom_call.1} parent=39 // pred_fallthru
          _
        // Predicated region
        $region57: #{tpu_custom_call.1} parent=39 // pred_check
          %p299 = pneg %p143
        $region58: #{tpu_custom_call.1} parent=39 // pred_check_branch
          %301 = sbr.rel (%p299) target = $region60
        $region59: #{tpu_custom_call.1} parent=39 // pred_region
          %303 = dma.done [#allocation14], 64
        $region60: #{tpu_custom_call.1} parent=39 // pred_fallthru
          _
        %s304 = sand.u32 %s46, 1
        %s305 = scalar_lea.sflag [#allocation8], %s304
        %s306 = sand.u32 %s46, 1
        %s307 = smul.addr %s306, 128
        %s308 = scalar_lea.vmem [#allocation7], %s307
        %p309 = pneg %p59
        %p310 = pneg %p56
        %p311 = pneg %p80
        %p312 = pneg %p77
        %p313 = pneg %p101
        %p314 = pneg %p98
        %p315 = pneg %p122
        %p316 = pneg %p119
        %p317 = pneg %p143
        %p318 = pneg %p140
        %p319 = pneg %p171
        %p320 = pneg %p168
        %s321 = sand.u32 %s158, 1
        %s322 = scalar_lea.sflag [#allocation9], %s321
        %s323 = sand.u32 %s158, 1
        %s324 = smul.addr %s323, 64
        %s325 = scalar_lea.vmem [#allocation16], %s324
        %s326 = smul.u32 8, %s29
        %s327 = smul.u32 8, %s29
        %p328 = scmp.eq.s32.totalorder %s29, 0
        // Predicated region
        $region61: #{tpu_custom_call.1} parent=39 // pred_check
          %p329 = pneg %p328
        $region62: #{tpu_custom_call.1} parent=39 // pred_check_branch
          %331 = sbr.rel (%p329) target = $region64
        $region63: #{tpu_custom_call.1} parent=39 // pred_region
          %332 = vst [vmem:[#allocation5] sm:$0xff] 0.0
          %333 = vst [vmem:[#allocation5 + $0x8] sm:$0xff] 0.0
          %334 = vst [vmem:[#allocation5 + $0x10] sm:$0xff] 0.0
          %335 = vst [vmem:[#allocation5 + $0x18] sm:$0xff] 0.0
          %336 = vst [vmem:[#allocation6] sm:$0xff] 0.0
          %337 = vst [vmem:[#allocation6 + $0x8] sm:$0xff] 0.0
        $region64: #{tpu_custom_call.1} parent=39 // pred_fallthru
          _
        %v338 = vld [vmem:[#allocation13] ss:$4 sm:$0x3]
        %s339 = scalar_lea.vmem [#allocation13], 1
        %v340 = vld [vmem:[%s339] ss:$4 sm:$0x3]
        %s341 = scalar_lea.vmem [#allocation13], 2
        %v342 = vld [vmem:[%s341] ss:$4 sm:$0x3]
        %v343 = vld [vmem:[#allocation15] sm:$0x1]
        %v344 = vld [vmem:[#allocation15 + $0x1] sm:$0x1]
        %v345 = vld [vmem:[#allocation15 + $0x2] sm:$0x1]
        %v346 = vld [vmem:[%s278] sm:$0xff]
        %v347 = vld [vmem:[%s278 + $0x8] sm:$0xff]
        %v348 = vld [vmem:[%s278 + $0x10] sm:$0xff]
        %v349 = vld [vmem:[%s278 + $0x18] sm:$0xff]
        %v350 = vld [vmem:[%s278 + $0x20] sm:$0xff]
        %v351 = vld [vmem:[%s278 + $0x28] sm:$0xff]
        %v352 = vld [vmem:[%s278 + $0x30] sm:$0xff]
        %v353 = vld [vmem:[%s278 + $0x38] sm:$0xff]
        %v354 = vld [vmem:[%s278 + $0x40] sm:$0xff]
        %v355 = vld [vmem:[%s278 + $0x48] sm:$0xff]
        %v356 = vld [vmem:[%s278 + $0x50] sm:$0xff]
        %v357 = vld [vmem:[%s278 + $0x58] sm:$0xff]
        %v358 = vld [vmem:[%s278 + $0x60] sm:$0xff]
        %v359 = vld [vmem:[%s278 + $0x68] sm:$0xff]
        %v360 = vld [vmem:[%s278 + $0x70] sm:$0xff]
        %v361 = vld [vmem:[%s278 + $0x78] sm:$0xff]
        %v362 = vpack.c.bf16 %v347, %v346
        %v363 = vpack.c.bf16 %v349, %v348
        %v364 = vpack.c.bf16 %v351, %v350
        %v365 = vpack.c.bf16 %v353, %v352
        %v366 = vpack.c.bf16 %v355, %v354
        %v367 = vpack.c.bf16 %v357, %v356
        %v368 = vpack.c.bf16 %v359, %v358
        %v369 = vpack.c.bf16 %v361, %v360
        %v370 = vld [vmem:[#allocation10] sm:$0xff]
        %v371 = vld [vmem:[#allocation10 + $0x8] sm:$0xff]
        %v372 = vld [vmem:[#allocation10 + $0x10] sm:$0xff]
        %v373 = vld [vmem:[#allocation10 + $0x18] sm:$0xff]
        %v374 = vld [vmem:[#allocation10 + $0x20] sm:$0xff]
        %v375 = vld [vmem:[#allocation10 + $0x28] sm:$0xff]
        %v376 = vld [vmem:[#allocation10 + $0x30] sm:$0xff]
        %v377 = vld [vmem:[#allocation10 + $0x38] sm:$0xff]
        %v378 = vld [vmem:[#allocation10 + $0x40] sm:$0xff]
        %v379 = vld [vmem:[#allocation10 + $0x48] sm:$0xff]
        %v380 = vld [vmem:[#allocation10 + $0x50] sm:$0xff]
        %v381 = vld [vmem:[#allocation10 + $0x58] sm:$0xff]
        %v382 = vld [vmem:[#allocation10 + $0x60] sm:$0xff]
        %v383 = vld [vmem:[#allocation10 + $0x68] sm:$0xff]
        %v384 = vld [vmem:[#allocation10 + $0x70] sm:$0xff]
        %v385 = vld [vmem:[#allocation10 + $0x78] sm:$0xff]
        %v387 = vperm.slane %v338, 0
        %v388 = vperm.slane %v338, 1
        %v407 = vunpack.c.l.b16 %v370
        %v408 = vunpack.c.h.b16 %v370
        %v409 = vunpack.c.l.b16 %v371
        %v410 = vunpack.c.h.b16 %v371
        %v411 = vunpack.c.l.b16 %v372
        %v412 = vunpack.c.h.b16 %v372
        %v413 = vunpack.c.l.b16 %v373
        %v414 = vunpack.c.h.b16 %v373
        %v415 = vunpack.c.l.b16 %v374
        %v416 = vunpack.c.h.b16 %v374
        %v417 = vunpack.c.l.b16 %v375
        %v418 = vunpack.c.h.b16 %v375
        %v419 = vunpack.c.l.b16 %v376
        %v420 = vunpack.c.h.b16 %v376
        %v421 = vunpack.c.l.b16 %v377
        %v422 = vunpack.c.h.b16 %v377
        %v423 = vunpack.c.l.b16 %v378
        %v424 = vunpack.c.h.b16 %v378
        %v425 = vunpack.c.l.b16 %v379
        %v426 = vunpack.c.h.b16 %v379
        %v427 = vunpack.c.l.b16 %v380
        %v428 = vunpack.c.h.b16 %v380
        %v429 = vunpack.c.l.b16 %v381
        %v430 = vunpack.c.h.b16 %v381
        %v431 = vunpack.c.l.b16 %v382
        %v432 = vunpack.c.h.b16 %v382
        %v433 = vunpack.c.l.b16 %v383
        %v434 = vunpack.c.h.b16 %v383
        %v435 = vunpack.c.l.b16 %v384
        %v436 = vunpack.c.h.b16 %v384
        %v437 = vunpack.c.l.b16 %v385
        %v438 = vunpack.c.h.b16 %v385
        %v439 = vpack.c.b16 %v409, %v407
        %v440 = vpack.c.b16 %v410, %v408
        %v441 = vpack.c.b16 %v413, %v411
        %v442 = vpack.c.b16 %v414, %v412
        %v443 = vpack.c.b16 %v417, %v415
        %v444 = vpack.c.b16 %v418, %v416
        %v445 = vpack.c.b16 %v421, %v419
        %v446 = vpack.c.b16 %v422, %v420
        %v447 = vpack.c.b16 %v425, %v423
        %v448 = vpack.c.b16 %v426, %v424
        %v449 = vpack.c.b16 %v429, %v427
        %v450 = vpack.c.b16 %v430, %v428
        %v451 = vpack.c.b16 %v433, %v431
        %v452 = vpack.c.b16 %v434, %v432
        %v453 = vpack.c.b16 %v437, %v435
        %v454 = vpack.c.b16 %v438, %v436
        %471 = vmatpush.bf16.msra.mxu0 %v453
        %472 = vmatpush.bf16.msra.mxu0 %v451
        %473 = vmatpush.bf16.msra.mxu0 %v449
        %474 = vmatpush.bf16.msra.mxu0 %v447
        %475 = vmatpush.bf16.msra.mxu0 %v445
        %476 = vmatpush.bf16.msra.mxu0 %v443
        %477 = vmatpush.bf16.msra.mxu0 %v441
        %478 = vmatpush.bf16.msra.mxu0 %v439
        %479 = vmatmul.bf16.gmra.mxu0 %v362
        %v480 = vpop.f32.mrf.mxu0
        %v481 = vadd.f32 %v387, %v480
        %v482 = vpop.f32.mrf.mxu0
        %v483 = vadd.f32 %v387, %v482
        %484 = vmatmul.bf16.gmra.mxu0 %v363
        %v485 = vpop.f32.mrf.mxu0
        %v486 = vadd.f32 %v387, %v485
        %v487 = vpop.f32.mrf.mxu0
        %v488 = vadd.f32 %v387, %v487
        %489 = vmatmul.bf16.gmra.mxu0 %v364
        %v490 = vpop.f32.mrf.mxu0
        %v491 = vadd.f32 %v387, %v490
        %v492 = vpop.f32.mrf.mxu0
        %v493 = vadd.f32 %v387, %v492
        %494 = vmatmul.bf16.gmra.mxu0 %v365
        %v495 = vpop.f32.mrf.mxu0
        %v496 = vadd.f32 %v387, %v495
        %v497 = vpop.f32.mrf.mxu0
        %v498 = vadd.f32 %v387, %v497
        %499 = vmatmul.bf16.gmra.mxu0 %v366
        %v500 = vpop.f32.mrf.mxu0
        %v501 = vadd.f32 %v387, %v500
        %v502 = vpop.f32.mrf.mxu0
        %v503 = vadd.f32 %v387, %v502
        %504 = vmatmul.bf16.gmra.mxu0 %v367
        %v505 = vpop.f32.mrf.mxu0
        %v506 = vadd.f32 %v387, %v505
        %v507 = vpop.f32.mrf.mxu0
        %v508 = vadd.f32 %v387, %v507
        %509 = vmatmul.bf16.gmra.mxu0 %v368
        %v510 = vpop.f32.mrf.mxu0
        %v511 = vadd.f32 %v387, %v510
        %v512 = vpop.f32.mrf.mxu0
        %v513 = vadd.f32 %v387, %v512
        %514 = vmatmul.bf16.gmra.mxu0 %v369
        %v515 = vpop.f32.mrf.mxu0
        %v516 = vadd.f32 %v387, %v515
        %v517 = vpop.f32.mrf.mxu0
        %v518 = vadd.f32 %v387, %v517
        %519 = vdwg.mxu0
        %520 = vmatpush.bf16.msra.mxu0 %v454
        %521 = vmatpush.bf16.msra.mxu0 %v452
        %522 = vmatpush.bf16.msra.mxu0 %v450
        %523 = vmatpush.bf16.msra.mxu0 %v448
        %524 = vmatpush.bf16.msra.mxu0 %v446
        %525 = vmatpush.bf16.msra.mxu0 %v444
        %526 = vmatpush.bf16.msra.mxu0 %v442
        %527 = vmatpush.bf16.msra.mxu0 %v440
        %528 = vmatmul.bf16.gmra.mxu0 %v362
        %v529 = vpop.f32.mrf.mxu0
        %v530 = vadd.f32 %v388, %v529
        %v531 = vpop.f32.mrf.mxu0
        %v532 = vadd.f32 %v388, %v531
        %533 = vmatmul.bf16.gmra.mxu0 %v363
        %v534 = vpop.f32.mrf.mxu0
        %v535 = vadd.f32 %v388, %v534
        %v536 = vpop.f32.mrf.mxu0
        %v537 = vadd.f32 %v388, %v536
        %538 = vmatmul.bf16.gmra.mxu0 %v364
        %v539 = vpop.f32.mrf.mxu0
        %v540 = vadd.f32 %v388, %v539
        %v541 = vpop.f32.mrf.mxu0
        %v542 = vadd.f32 %v388, %v541
        %543 = vmatmul.bf16.gmra.mxu0 %v365
        %v544 = vpop.f32.mrf.mxu0
        %v545 = vadd.f32 %v388, %v544
        %v546 = vpop.f32.mrf.mxu0
        %v547 = vadd.f32 %v388, %v546
        %548 = vmatmul.bf16.gmra.mxu0 %v366
        %v549 = vpop.f32.mrf.mxu0
        %v550 = vadd.f32 %v388, %v549
        %v551 = vpop.f32.mrf.mxu0
        %v552 = vadd.f32 %v388, %v551
        %553 = vmatmul.bf16.gmra.mxu0 %v367
        %v554 = vpop.f32.mrf.mxu0
        %v555 = vadd.f32 %v388, %v554
        %v556 = vpop.f32.mrf.mxu0
        %v557 = vadd.f32 %v388, %v556
        %558 = vmatmul.bf16.gmra.mxu0 %v368
        %v559 = vpop.f32.mrf.mxu0
        %v560 = vadd.f32 %v388, %v559
        %v561 = vpop.f32.mrf.mxu0
        %v562 = vadd.f32 %v388, %v561
        %563 = vmatmul.bf16.gmra.mxu0 %v369
        %v564 = vpop.f32.mrf.mxu0
        %v565 = vadd.f32 %v388, %v564
        %v566 = vpop.f32.mrf.mxu0
        %v567 = vadd.f32 %v388, %v566
        %568 = vdwg.mxu0
        %v569 = vadd.f32 %v481, %v530
        %570 = vadd.xlane.f32.xlu0 %v569
        %v571 = vpop.xlane.xlu0 %570
        %v572 = vadd.f32 %v483, %v532
        %573 = vadd.xlane.f32.xlu0 %v572
        %v574 = vpop.xlane.xlu0 %573
        %v575 = vadd.f32 %v486, %v535
        %576 = vadd.xlane.f32.xlu0 %v575
        %v577 = vpop.xlane.xlu0 %576
        %v578 = vadd.f32 %v488, %v537
        %579 = vadd.xlane.f32.xlu0 %v578
        %v580 = vpop.xlane.xlu0 %579
        %v581 = vadd.f32 %v491, %v540
        %582 = vadd.xlane.f32.xlu0 %v581
        %v583 = vpop.xlane.xlu0 %582
        %v584 = vadd.f32 %v493, %v542
        %585 = vadd.xlane.f32.xlu0 %v584
        %v586 = vpop.xlane.xlu0 %585
        %v587 = vadd.f32 %v496, %v545
        %588 = vadd.xlane.f32.xlu0 %v587
        %v589 = vpop.xlane.xlu0 %588
        %v590 = vadd.f32 %v498, %v547
        %591 = vadd.xlane.f32.xlu0 %v590
        %v592 = vpop.xlane.xlu0 %591
        %v593 = vadd.f32 %v501, %v550
        %594 = vadd.xlane.f32.xlu0 %v593
        %v595 = vpop.xlane.xlu0 %594
        %v596 = vadd.f32 %v503, %v552
        %597 = vadd.xlane.f32.xlu0 %v596
        %v598 = vpop.xlane.xlu0 %597
        %v599 = vadd.f32 %v506, %v555
        %600 = vadd.xlane.f32.xlu0 %v599
        %v601 = vpop.xlane.xlu0 %600
        %v602 = vadd.f32 %v508, %v557
        %603 = vadd.xlane.f32.xlu0 %v602
        %v604 = vpop.xlane.xlu0 %603
        %v605 = vadd.f32 %v511, %v560
        %606 = vadd.xlane.f32.xlu0 %v605
        %v607 = vpop.xlane.xlu0 %606
        %v608 = vadd.f32 %v513, %v562
        %609 = vadd.xlane.f32.xlu0 %v608
        %v610 = vpop.xlane.xlu0 %609
        %v611 = vadd.f32 %v516, %v565
        %612 = vadd.xlane.f32.xlu0 %v611
        %v613 = vpop.xlane.xlu0 %612
        %v614 = vadd.f32 %v518, %v567
        %615 = vadd.xlane.f32.xlu0 %v614
        %v616 = vpop.xlane.xlu0 %615
        %v617 = vrcp.pop 256.0
        %v618 = vmul.f32 256.0, %v617
        %v619 = vsub.f32 1.0, %v618
        %v620 = vmul.f32 %v617, %v619
        %v621 = vadd.f32 %v617, %v620
        %vm622 = vweird.f32 %v617
        %v623 = vsel %vm622, %v617, %v621
        %v624 = vmul.f32 %v571, %v623
        %v625 = vmul.f32 %v574, %v623
        %v626 = vmul.f32 %v577, %v623
        %v627 = vmul.f32 %v580, %v623
        %v628 = vmul.f32 %v583, %v623
        %v629 = vmul.f32 %v586, %v623
        %v630 = vmul.f32 %v589, %v623
        %v631 = vmul.f32 %v592, %v623
        %v632 = vmul.f32 %v595, %v623
        %v633 = vmul.f32 %v598, %v623
        %v634 = vmul.f32 %v601, %v623
        %v635 = vmul.f32 %v604, %v623
        %v636 = vmul.f32 %v607, %v623
        %v637 = vmul.f32 %v610, %v623
        %v638 = vmul.f32 %v613, %v623
        %v639 = vmul.f32 %v616, %v623
        %v640 = vmul.f32 %v481, %v481
        %v641 = vmul.f32 %v530, %v530
        %v642 = vmul.f32 %v483, %v483
        %v643 = vmul.f32 %v532, %v532
        %v644 = vmul.f32 %v486, %v486
        %v645 = vmul.f32 %v535, %v535
        %v646 = vmul.f32 %v488, %v488
        %v647 = vmul.f32 %v537, %v537
        %v648 = vmul.f32 %v491, %v491
        %v649 = vmul.f32 %v540, %v540
        %v650 = vmul.f32 %v493, %v493
        %v651 = vmul.f32 %v542, %v542
        %v652 = vmul.f32 %v496, %v496
        %v653 = vmul.f32 %v545, %v545
        %v654 = vmul.f32 %v498, %v498
        %v655 = vmul.f32 %v547, %v547
        %v656 = vmul.f32 %v501, %v501
        %v657 = vmul.f32 %v550, %v550
        %v658 = vmul.f32 %v503, %v503
        %v659 = vmul.f32 %v552, %v552
        %v660 = vmul.f32 %v506, %v506
        %v661 = vmul.f32 %v555, %v555
        %v662 = vmul.f32 %v508, %v508
        %v663 = vmul.f32 %v557, %v557
        %v664 = vmul.f32 %v511, %v511
        %v665 = vmul.f32 %v560, %v560
        %v666 = vmul.f32 %v513, %v513
        %v667 = vmul.f32 %v562, %v562
        %v668 = vmul.f32 %v516, %v516
        %v669 = vmul.f32 %v565, %v565
        %v670 = vmul.f32 %v518, %v518
        %v671 = vmul.f32 %v567, %v567
        %v672 = vadd.f32 %v640, %v641
        %673 = vadd.xlane.f32.xlu0 %v672
        %v674 = vpop.xlane.xlu0 %673
        %v675 = vadd.f32 %v642, %v643
        %676 = vadd.xlane.f32.xlu0 %v675
        %v677 = vpop.xlane.xlu0 %676
        %v678 = vadd.f32 %v644, %v645
        %679 = vadd.xlane.f32.xlu0 %v678
        %v680 = vpop.xlane.xlu0 %679
        %v681 = vadd.f32 %v646, %v647
        %682 = vadd.xlane.f32.xlu0 %v681
        %v683 = vpop.xlane.xlu0 %682
        %v684 = vadd.f32 %v648, %v649
        %685 = vadd.xlane.f32.xlu0 %v684
        %v686 = vpop.xlane.xlu0 %685
        %v687 = vadd.f32 %v650, %v651
        %688 = vadd.xlane.f32.xlu0 %v687
        %v689 = vpop.xlane.xlu0 %688
        %v690 = vadd.f32 %v652, %v653
        %691 = vadd.xlane.f32.xlu0 %v690
        %v692 = vpop.xlane.xlu0 %691
        %v693 = vadd.f32 %v654, %v655
        %694 = vadd.xlane.f32.xlu0 %v693
        %v695 = vpop.xlane.xlu0 %694
        %v696 = vadd.f32 %v656, %v657
        %697 = vadd.xlane.f32.xlu0 %v696
        %v698 = vpop.xlane.xlu0 %697
        %v699 = vadd.f32 %v658, %v659
        %700 = vadd.xlane.f32.xlu0 %v699
        %v701 = vpop.xlane.xlu0 %700
        %v702 = vadd.f32 %v660, %v661
        %703 = vadd.xlane.f32.xlu0 %v702
        %v704 = vpop.xlane.xlu0 %703
        %v705 = vadd.f32 %v662, %v663
        %706 = vadd.xlane.f32.xlu0 %v705
        %v707 = vpop.xlane.xlu0 %706
        %v708 = vadd.f32 %v664, %v665
        %709 = vadd.xlane.f32.xlu0 %v708
        %v710 = vpop.xlane.xlu0 %709
        %v711 = vadd.f32 %v666, %v667
        %712 = vadd.xlane.f32.xlu0 %v711
        %v713 = vpop.xlane.xlu0 %712
        %v714 = vadd.f32 %v668, %v669
        %715 = vadd.xlane.f32.xlu0 %v714
        %v716 = vpop.xlane.xlu0 %715
        %v717 = vadd.f32 %v670, %v671
        %718 = vadd.xlane.f32.xlu0 %v717
        %v719 = vpop.xlane.xlu0 %718
        %v720 = vmul.f32 %v674, %v623
        %v721 = vmul.f32 %v677, %v623
        %v722 = vmul.f32 %v680, %v623
        %v723 = vmul.f32 %v683, %v623
        %v724 = vmul.f32 %v686, %v623
        %v725 = vmul.f32 %v689, %v623
        %v726 = vmul.f32 %v692, %v623
        %v727 = vmul.f32 %v695, %v623
        %v728 = vmul.f32 %v698, %v623
        %v729 = vmul.f32 %v701, %v623
        %v730 = vmul.f32 %v704, %v623
        %v731 = vmul.f32 %v707, %v623
        %v732 = vmul.f32 %v710, %v623
        %v733 = vmul.f32 %v713, %v623
        %v734 = vmul.f32 %v716, %v623
        %v735 = vmul.f32 %v719, %v623
        %v736 = vmul.f32 %v624, %v624
        %v737 = vmul.f32 %v625, %v625
        %v738 = vmul.f32 %v626, %v626
        %v739 = vmul.f32 %v627, %v627
        %v740 = vmul.f32 %v628, %v628
        %v741 = vmul.f32 %v629, %v629
        %v742 = vmul.f32 %v630, %v630
        %v743 = vmul.f32 %v631, %v631
        %v744 = vmul.f32 %v632, %v632
        %v745 = vmul.f32 %v633, %v633
        %v746 = vmul.f32 %v634, %v634
        %v747 = vmul.f32 %v635, %v635
        %v748 = vmul.f32 %v636, %v636
        %v749 = vmul.f32 %v637, %v637
        %v750 = vmul.f32 %v638, %v638
        %v751 = vmul.f32 %v639, %v639
        %v752 = vsub.f32 %v720, %v736
        %v753 = vsub.f32 %v721, %v737
        %v754 = vsub.f32 %v722, %v738
        %v755 = vsub.f32 %v723, %v739
        %v756 = vsub.f32 %v724, %v740
        %v757 = vsub.f32 %v725, %v741
        %v758 = vsub.f32 %v726, %v742
        %v759 = vsub.f32 %v727, %v743
        %v760 = vsub.f32 %v728, %v744
        %v761 = vsub.f32 %v729, %v745
        %v762 = vsub.f32 %v730, %v746
        %v763 = vsub.f32 %v731, %v747
        %v764 = vsub.f32 %v732, %v748
        %v765 = vsub.f32 %v733, %v749
        %v766 = vsub.f32 %v734, %v750
        %v767 = vsub.f32 %v735, %v751
        %v768 = vsub.f32 %v481, %v624
        %v769 = vsub.f32 %v530, %v624
        %v770 = vsub.f32 %v483, %v625
        %v771 = vsub.f32 %v532, %v625
        %v772 = vsub.f32 %v486, %v626
        %v773 = vsub.f32 %v535, %v626
        %v774 = vsub.f32 %v488, %v627
        %v775 = vsub.f32 %v537, %v627
        %v776 = vsub.f32 %v491, %v628
        %v777 = vsub.f32 %v540, %v628
        %v778 = vsub.f32 %v493, %v629
        %v779 = vsub.f32 %v542, %v629
        %v780 = vsub.f32 %v496, %v630
        %v781 = vsub.f32 %v545, %v630
        %v782 = vsub.f32 %v498, %v631
        %v783 = vsub.f32 %v547, %v631
        %v784 = vsub.f32 %v501, %v632
        %v785 = vsub.f32 %v550, %v632
        %v786 = vsub.f32 %v503, %v633
        %v787 = vsub.f32 %v552, %v633
        %v788 = vsub.f32 %v506, %v634
        %v789 = vsub.f32 %v555, %v634
        %v790 = vsub.f32 %v508, %v635
        %v791 = vsub.f32 %v557, %v635
        %v792 = vsub.f32 %v511, %v636
        %v793 = vsub.f32 %v560, %v636
        %v794 = vsub.f32 %v513, %v637
        %v795 = vsub.f32 %v562, %v637
        %v796 = vsub.f32 %v516, %v638
        %v797 = vsub.f32 %v565, %v638
        %v798 = vsub.f32 %v518, %v639
        %v799 = vsub.f32 %v567, %v639
        %v800 = vadd.f32 %v752, 1e-05
        %v801 = vadd.f32 %v753, 1e-05
        %v802 = vadd.f32 %v754, 1e-05
        %v803 = vadd.f32 %v755, 1e-05
        %v804 = vadd.f32 %v756, 1e-05
        %v805 = vadd.f32 %v757, 1e-05
        %v806 = vadd.f32 %v758, 1e-05
        %v807 = vadd.f32 %v759, 1e-05
        %v808 = vadd.f32 %v760, 1e-05
        %v809 = vadd.f32 %v761, 1e-05
        %v810 = vadd.f32 %v762, 1e-05
        %v811 = vadd.f32 %v763, 1e-05
        %v812 = vadd.f32 %v764, 1e-05
        %v813 = vadd.f32 %v765, 1e-05
        %v814 = vadd.f32 %v766, 1e-05
        %v815 = vadd.f32 %v767, 1e-05
        %v816 = vrsqrt.pop %v800
        %v817 = vmul.f32 %v816, %v800
        %v818 = vmul.f32 %v817, %v816
        %v819 = vmul.f32 0.5, %v818
        %v820 = vsub.f32 1.5, %v819
        %v821 = vmul.f32 %v816, %v820
        %vm822 = vweird.f32 %v800
        %vm823 = vweird.f32 %v816
        %vm824 = vmor %vm822, %vm823
        %v825 = vsel %vm824, %v816, %v821
        %v826 = vrsqrt.pop %v801
        %v827 = vmul.f32 %v826, %v801
        %v828 = vmul.f32 %v827, %v826
        %v829 = vmul.f32 0.5, %v828
        %v830 = vsub.f32 1.5, %v829
        %v831 = vmul.f32 %v826, %v830
        %vm832 = vweird.f32 %v801
        %vm833 = vweird.f32 %v826
        %vm834 = vmor %vm832, %vm833
        %v835 = vsel %vm834, %v826, %v831
        %v836 = vrsqrt.pop %v802
        %v837 = vmul.f32 %v836, %v802
        %v838 = vmul.f32 %v837, %v836
        %v839 = vmul.f32 0.5, %v838
        %v840 = vsub.f32 1.5, %v839
        %v841 = vmul.f32 %v836, %v840
        %vm842 = vweird.f32 %v802
        %vm843 = vweird.f32 %v836
        %vm844 = vmor %vm842, %vm843
        %v845 = vsel %vm844, %v836, %v841
        %v846 = vrsqrt.pop %v803
        %v847 = vmul.f32 %v846, %v803
        %v848 = vmul.f32 %v847, %v846
        %v849 = vmul.f32 0.5, %v848
        %v850 = vsub.f32 1.5, %v849
        %v851 = vmul.f32 %v846, %v850
        %vm852 = vweird.f32 %v803
        %vm853 = vweird.f32 %v846
        %vm854 = vmor %vm852, %vm853
        %v855 = vsel %vm854, %v846, %v851
        %v856 = vrsqrt.pop %v804
        %v857 = vmul.f32 %v856, %v804
        %v858 = vmul.f32 %v857, %v856
        %v859 = vmul.f32 0.5, %v858
        %v860 = vsub.f32 1.5, %v859
        %v861 = vmul.f32 %v856, %v860
        %vm862 = vweird.f32 %v804
        %vm863 = vweird.f32 %v856
        %vm864 = vmor %vm862, %vm863
        %v865 = vsel %vm864, %v856, %v861
        %v866 = vrsqrt.pop %v805
        %v867 = vmul.f32 %v866, %v805
        %v868 = vmul.f32 %v867, %v866
        %v869 = vmul.f32 0.5, %v868
        %v870 = vsub.f32 1.5, %v869
        %v871 = vmul.f32 %v866, %v870
        %vm872 = vweird.f32 %v805
        %vm873 = vweird.f32 %v866
        %vm874 = vmor %vm872, %vm873
        %v875 = vsel %vm874, %v866, %v871
        %v876 = vrsqrt.pop %v806
        %v877 = vmul.f32 %v876, %v806
        %v878 = vmul.f32 %v877, %v876
        %v879 = vmul.f32 0.5, %v878
        %v880 = vsub.f32 1.5, %v879
        %v881 = vmul.f32 %v876, %v880
        %vm882 = vweird.f32 %v806
        %vm883 = vweird.f32 %v876
        %vm884 = vmor %vm882, %vm883
        %v885 = vsel %vm884, %v876, %v881
        %v886 = vrsqrt.pop %v807
        %v887 = vmul.f32 %v886, %v807
        %v888 = vmul.f32 %v887, %v886
        %v889 = vmul.f32 0.5, %v888
        %v890 = vsub.f32 1.5, %v889
        %v891 = vmul.f32 %v886, %v890
        %vm892 = vweird.f32 %v807
        %vm893 = vweird.f32 %v886
        %vm894 = vmor %vm892, %vm893
        %v895 = vsel %vm894, %v886, %v891
        %v896 = vrsqrt.pop %v808
        %v897 = vmul.f32 %v896, %v808
        %v898 = vmul.f32 %v897, %v896
        %v899 = vmul.f32 0.5, %v898
        %v900 = vsub.f32 1.5, %v899
        %v901 = vmul.f32 %v896, %v900
        %vm902 = vweird.f32 %v808
        %vm903 = vweird.f32 %v896
        %vm904 = vmor %vm902, %vm903
        %v905 = vsel %vm904, %v896, %v901
        %v906 = vrsqrt.pop %v809
        %v907 = vmul.f32 %v906, %v809
        %v908 = vmul.f32 %v907, %v906
        %v909 = vmul.f32 0.5, %v908
        %v910 = vsub.f32 1.5, %v909
        %v911 = vmul.f32 %v906, %v910
        %vm912 = vweird.f32 %v809
        %vm913 = vweird.f32 %v906
        %vm914 = vmor %vm912, %vm913
        %v915 = vsel %vm914, %v906, %v911
        %v916 = vrsqrt.pop %v810
        %v917 = vmul.f32 %v916, %v810
        %v918 = vmul.f32 %v917, %v916
        %v919 = vmul.f32 0.5, %v918
        %v920 = vsub.f32 1.5, %v919
        %v921 = vmul.f32 %v916, %v920
        %vm922 = vweird.f32 %v810
        %vm923 = vweird.f32 %v916
        %vm924 = vmor %vm922, %vm923
        %v925 = vsel %vm924, %v916, %v921
        %v926 = vrsqrt.pop %v811
        %v927 = vmul.f32 %v926, %v811
        %v928 = vmul.f32 %v927, %v926
        %v929 = vmul.f32 0.5, %v928
        %v930 = vsub.f32 1.5, %v929
        %v931 = vmul.f32 %v926, %v930
        %vm932 = vweird.f32 %v811
        %vm933 = vweird.f32 %v926
        %vm934 = vmor %vm932, %vm933
        %v935 = vsel %vm934, %v926, %v931
        %v936 = vrsqrt.pop %v812
        %v937 = vmul.f32 %v936, %v812
        %v938 = vmul.f32 %v937, %v936
        %v939 = vmul.f32 0.5, %v938
        %v940 = vsub.f32 1.5, %v939
        %v941 = vmul.f32 %v936, %v940
        %vm942 = vweird.f32 %v812
        %vm943 = vweird.f32 %v936
        %vm944 = vmor %vm942, %vm943
        %v945 = vsel %vm944, %v936, %v941
        %v946 = vrsqrt.pop %v813
        %v947 = vmul.f32 %v946, %v813
        %v948 = vmul.f32 %v947, %v946
        %v949 = vmul.f32 0.5, %v948
        %v950 = vsub.f32 1.5, %v949
        %v951 = vmul.f32 %v946, %v950
        %vm952 = vweird.f32 %v813
        %vm953 = vweird.f32 %v946
        %vm954 = vmor %vm952, %vm953
        %v955 = vsel %vm954, %v946, %v951
        %v956 = vrsqrt.pop %v814
        %v957 = vmul.f32 %v956, %v814
        %v958 = vmul.f32 %v957, %v956
        %v959 = vmul.f32 0.5, %v958
        %v960 = vsub.f32 1.5, %v959
        %v961 = vmul.f32 %v956, %v960
        %vm962 = vweird.f32 %v814
        %vm963 = vweird.f32 %v956
        %vm964 = vmor %vm962, %vm963
        %v965 = vsel %vm964, %v956, %v961
        %v966 = vrsqrt.pop %v815
        %v967 = vmul.f32 %v966, %v815
        %v968 = vmul.f32 %v967, %v966
        %v969 = vmul.f32 0.5, %v968
        %v970 = vsub.f32 1.5, %v969
        %v971 = vmul.f32 %v966, %v970
        %vm972 = vweird.f32 %v815
        %vm973 = vweird.f32 %v966
        %vm974 = vmor %vm972, %vm973
        %v975 = vsel %vm974, %v966, %v971
        %v976 = vmul.f32 %v768, %v825
        %v977 = vmul.f32 %v769, %v825
        %v978 = vmul.f32 %v770, %v835
        %v979 = vmul.f32 %v771, %v835
        %v980 = vmul.f32 %v772, %v845
        %v981 = vmul.f32 %v773, %v845
        %v982 = vmul.f32 %v774, %v855
        %v983 = vmul.f32 %v775, %v855
        %v984 = vmul.f32 %v776, %v865
        %v985 = vmul.f32 %v777, %v865
        %v986 = vmul.f32 %v778, %v875
        %v987 = vmul.f32 %v779, %v875
        %v988 = vmul.f32 %v780, %v885
        %v989 = vmul.f32 %v781, %v885
        %v990 = vmul.f32 %v782, %v895
        %v991 = vmul.f32 %v783, %v895
        %v992 = vmul.f32 %v784, %v905
        %v993 = vmul.f32 %v785, %v905
        %v994 = vmul.f32 %v786, %v915
        %v995 = vmul.f32 %v787, %v915
        %v996 = vmul.f32 %v788, %v925
        %v997 = vmul.f32 %v789, %v925
        %v998 = vmul.f32 %v790, %v935
        %v999 = vmul.f32 %v791, %v935
        %v1000 = vmul.f32 %v792, %v945
        %v1001 = vmul.f32 %v793, %v945
        %v1002 = vmul.f32 %v794, %v955
        %v1003 = vmul.f32 %v795, %v955
        %v1004 = vmul.f32 %v796, %v965
        %v1005 = vmul.f32 %v797, %v965
        %v1006 = vmul.f32 %v798, %v975
        %v1007 = vmul.f32 %v799, %v975
        %v1009 = vperm.slane %v340, 0
        %v1010 = vperm.slane %v340, 1
        %v1013 = vmul.f32 %v976, %v1009
        %v1014 = vmul.f32 %v977, %v1010
        %v1015 = vmul.f32 %v978, %v1009
        %v1016 = vmul.f32 %v979, %v1010
        %v1017 = vmul.f32 %v980, %v1009
        %v1018 = vmul.f32 %v981, %v1010
        %v1019 = vmul.f32 %v982, %v1009
        %v1020 = vmul.f32 %v983, %v1010
        %v1021 = vmul.f32 %v984, %v1009
        %v1022 = vmul.f32 %v985, %v1010
        %v1023 = vmul.f32 %v986, %v1009
        %v1024 = vmul.f32 %v987, %v1010
        %v1025 = vmul.f32 %v988, %v1009
        %v1026 = vmul.f32 %v989, %v1010
        %v1027 = vmul.f32 %v990, %v1009
        %v1028 = vmul.f32 %v991, %v1010
        %v1029 = vmul.f32 %v992, %v1009
        %v1030 = vmul.f32 %v993, %v1010
        %v1031 = vmul.f32 %v994, %v1009
        %v1032 = vmul.f32 %v995, %v1010
        %v1033 = vmul.f32 %v996, %v1009
        %v1034 = vmul.f32 %v997, %v1010
        %v1035 = vmul.f32 %v998, %v1009
        %v1036 = vmul.f32 %v999, %v1010
        %v1037 = vmul.f32 %v1000, %v1009
        %v1038 = vmul.f32 %v1001, %v1010
        %v1039 = vmul.f32 %v1002, %v1009
        %v1040 = vmul.f32 %v1003, %v1010
        %v1041 = vmul.f32 %v1004, %v1009
        %v1042 = vmul.f32 %v1005, %v1010
        %v1043 = vmul.f32 %v1006, %v1009
        %v1044 = vmul.f32 %v1007, %v1010
        %v1046 = vperm.slane %v342, 0
        %v1047 = vperm.slane %v342, 1
        %v1050 = vadd.f32 %v1013, %v1046
        %v1051 = vadd.f32 %v1014, %v1047
        %v1052 = vadd.f32 %v1015, %v1046
        %v1053 = vadd.f32 %v1016, %v1047
        %v1054 = vadd.f32 %v1017, %v1046
        %v1055 = vadd.f32 %v1018, %v1047
        %v1056 = vadd.f32 %v1019, %v1046
        %v1057 = vadd.f32 %v1020, %v1047
        %v1058 = vadd.f32 %v1021, %v1046
        %v1059 = vadd.f32 %v1022, %v1047
        %v1060 = vadd.f32 %v1023, %v1046
        %v1061 = vadd.f32 %v1024, %v1047
        %v1062 = vadd.f32 %v1025, %v1046
        %v1063 = vadd.f32 %v1026, %v1047
        %v1064 = vadd.f32 %v1027, %v1046
        %v1065 = vadd.f32 %v1028, %v1047
        %v1066 = vadd.f32 %v1029, %v1046
        %v1067 = vadd.f32 %v1030, %v1047
        %v1068 = vadd.f32 %v1031, %v1046
        %v1069 = vadd.f32 %v1032, %v1047
        %v1070 = vadd.f32 %v1033, %v1046
        %v1071 = vadd.f32 %v1034, %v1047
        %v1072 = vadd.f32 %v1035, %v1046
        %v1073 = vadd.f32 %v1036, %v1047
        %v1074 = vadd.f32 %v1037, %v1046
        %v1075 = vadd.f32 %v1038, %v1047
        %v1076 = vadd.f32 %v1039, %v1046
        %v1077 = vadd.f32 %v1040, %v1047
        %v1078 = vadd.f32 %v1041, %v1046
        %v1079 = vadd.f32 %v1042, %v1047
        %v1080 = vadd.f32 %v1043, %v1046
        %v1081 = vadd.f32 %v1044, %v1047
        %1082 = vst [vmem:[#allocation2] sm:$0xff] %v1050
        %1083 = vst [vmem:[#allocation2 + $0x8] sm:$0xff] %v1051
        %1084 = vst [vmem:[#allocation2 + $0x10] sm:$0xff] %v1052
        %1085 = vst [vmem:[#allocation2 + $0x18] sm:$0xff] %v1053
        %1086 = vst [vmem:[#allocation2 + $0x20] sm:$0xff] %v1054
        %1087 = vst [vmem:[#allocation2 + $0x28] sm:$0xff] %v1055
        %1088 = vst [vmem:[#allocation2 + $0x30] sm:$0xff] %v1056
        %1089 = vst [vmem:[#allocation2 + $0x38] sm:$0xff] %v1057
        %1090 = vst [vmem:[#allocation2 + $0x40] sm:$0xff] %v1058
        %1091 = vst [vmem:[#allocation2 + $0x48] sm:$0xff] %v1059
        %1092 = vst [vmem:[#allocation2 + $0x50] sm:$0xff] %v1060
        %1093 = vst [vmem:[#allocation2 + $0x58] sm:$0xff] %v1061
        %1094 = vst [vmem:[#allocation2 + $0x60] sm:$0xff] %v1062
        %1095 = vst [vmem:[#allocation2 + $0x68] sm:$0xff] %v1063
        %1096 = vst [vmem:[#allocation2 + $0x70] sm:$0xff] %v1064
        %1097 = vst [vmem:[#allocation2 + $0x78] sm:$0xff] %v1065
        %1098 = vst [vmem:[#allocation2 + $0x80] sm:$0xff] %v1066
        %1099 = vst [vmem:[#allocation2 + $0x88] sm:$0xff] %v1067
        %1100 = vst [vmem:[#allocation2 + $0x90] sm:$0xff] %v1068
        %1101 = vst [vmem:[#allocation2 + $0x98] sm:$0xff] %v1069
        %1102 = vst [vmem:[#allocation2 + $0xa0] sm:$0xff] %v1070
        %1103 = vst [vmem:[#allocation2 + $0xa8] sm:$0xff] %v1071
        %1104 = vst [vmem:[#allocation2 + $0xb0] sm:$0xff] %v1072
        %1105 = vst [vmem:[#allocation2 + $0xb8] sm:$0xff] %v1073
        %1106 = vst [vmem:[#allocation2 + $0xc0] sm:$0xff] %v1074
        %1107 = vst [vmem:[#allocation2 + $0xc8] sm:$0xff] %v1075
        %1108 = vst [vmem:[#allocation2 + $0xd0] sm:$0xff] %v1076
        %1109 = vst [vmem:[#allocation2 + $0xd8] sm:$0xff] %v1077
        %1110 = vst [vmem:[#allocation2 + $0xe0] sm:$0xff] %v1078
        %1111 = vst [vmem:[#allocation2 + $0xe8] sm:$0xff] %v1079
        %1112 = vst [vmem:[#allocation2 + $0xf0] sm:$0xff] %v1080
        %1113 = vst [vmem:[#allocation2 + $0xf8] sm:$0xff] %v1081
        %v1114 = vld [vmem:[#allocation5] sm:$0xff]
        %v1115 = vld [vmem:[#allocation5 + $0x8] sm:$0xff]
        %v1116 = vld [vmem:[#allocation5 + $0x10] sm:$0xff]
        %v1117 = vld [vmem:[#allocation5 + $0x18] sm:$0xff]
        %v1118 = vld [vmem:[#allocation2] sm:$0xff]
        %v1119 = vld [vmem:[#allocation2 + $0x8] sm:$0xff]
        %v1120 = vld [vmem:[#allocation2 + $0x10] sm:$0xff]
        %v1121 = vld [vmem:[#allocation2 + $0x18] sm:$0xff]
        %v1122 = vsub.f32 %v1118, %v1114
        %v1123 = vsub.f32 %v1119, %v1115
        %v1124 = vsub.f32 %v1120, %v1116
        %v1125 = vsub.f32 %v1121, %v1117
        %v1126 = vmul.f32 %v1122, 0.5
        %v1127 = vmul.f32 %v1123, 0.5
        %v1128 = vmul.f32 %v1124, 0.5
        %v1129 = vmul.f32 %v1125, 0.5
        %v1130 = vadd.f32 %v1114, %v1126
        %v1131 = vadd.f32 %v1115, %v1127
        %v1132 = vadd.f32 %v1116, %v1128
        %v1133 = vadd.f32 %v1117, %v1129
        %vm1134 = vcmp.ge.f32.partialorder %v1130, 1.0
        %vm1135 = vcmp.ge.f32.partialorder %v1131, 1.0
        %vm1136 = vcmp.ge.f32.partialorder %v1132, 1.0
        %vm1137 = vcmp.ge.f32.partialorder %v1133, 1.0
        %v1138 = vsel %vm1134, 1, 0
        %v1139 = vsel %vm1135, 1, 0
        %v1140 = vsel %vm1136, 1, 0
        %v1141 = vsel %vm1137, 1, 0
        %v1142 = vcvt.s32.f32 %v1138
        %v1143 = vcvt.s32.f32 %v1139
        %v1144 = vcvt.s32.f32 %v1140
        %v1145 = vcvt.s32.f32 %v1141
        %v1146 = vpack.c.bf16 %v1143, %v1142
        %v1147 = vpack.c.bf16 %v1145, %v1144
        %1148 = vst [vmem:[#allocation3] sm:$0xff] %v1146
        %1149 = vst [vmem:[#allocation3 + $0x8] sm:$0xff] %v1147
        %v1150 = vsel %vm1134, 0.0, %v1130
        %v1151 = vsel %vm1135, 0.0, %v1131
        %v1152 = vsel %vm1136, 0.0, %v1132
        %v1153 = vsel %vm1137, 0.0, %v1133
        %s1154 = scalar_lea.vmem [#allocation2], 32
        %v1155 = vld [vmem:[%s1154] sm:$0xff]
        %v1156 = vld [vmem:[%s1154 + $0x8] sm:$0xff]
        %v1157 = vld [vmem:[%s1154 + $0x10] sm:$0xff]
        %v1158 = vld [vmem:[%s1154 + $0x18] sm:$0xff]
        %v1159 = vsub.f32 %v1155, %v1150
        %v1160 = vsub.f32 %v1156, %v1151
        %v1161 = vsub.f32 %v1157, %v1152
        %v1162 = vsub.f32 %v1158, %v1153
        %v1163 = vmul.f32 %v1159, 0.5
        %v1164 = vmul.f32 %v1160, 0.5
        %v1165 = vmul.f32 %v1161, 0.5
        %v1166 = vmul.f32 %v1162, 0.5
        %v1167 = vadd.f32 %v1150, %v1163
        %v1168 = vadd.f32 %v1151, %v1164
        %v1169 = vadd.f32 %v1152, %v1165
        %v1170 = vadd.f32 %v1153, %v1166
        %vm1171 = vcmp.ge.f32.partialorder %v1167, 1.0
        %vm1172 = vcmp.ge.f32.partialorder %v1168, 1.0
        %vm1173 = vcmp.ge.f32.partialorder %v1169, 1.0
        %vm1174 = vcmp.ge.f32.partialorder %v1170, 1.0
        %v1175 = vsel %vm1171, 1, 0
        %v1176 = vsel %vm1172, 1, 0
        %v1177 = vsel %vm1173, 1, 0
        %v1178 = vsel %vm1174, 1, 0
        %v1179 = vcvt.s32.f32 %v1175
        %v1180 = vcvt.s32.f32 %v1176
        %v1181 = vcvt.s32.f32 %v1177
        %v1182 = vcvt.s32.f32 %v1178
        %v1183 = vpack.c.bf16 %v1180, %v1179
        %v1184 = vpack.c.bf16 %v1182, %v1181
        %s1185 = scalar_lea.vmem [#allocation3], 16
        %1186 = vst [vmem:[%s1185] sm:$0xff] %v1183
        %1187 = vst [vmem:[%s1185 + $0x8] sm:$0xff] %v1184
        %v1188 = vsel %vm1171, 0.0, %v1167
        %v1189 = vsel %vm1172, 0.0, %v1168
        %v1190 = vsel %vm1173, 0.0, %v1169
        %v1191 = vsel %vm1174, 0.0, %v1170
        %s1192 = scalar_lea.vmem [#allocation2], 64
        %v1193 = vld [vmem:[%s1192] sm:$0xff]
        %v1194 = vld [vmem:[%s1192 + $0x8] sm:$0xff]
        %v1195 = vld [vmem:[%s1192 + $0x10] sm:$0xff]
        %v1196 = vld [vmem:[%s1192 + $0x18] sm:$0xff]
        %v1197 = vsub.f32 %v1193, %v1188
        %v1198 = vsub.f32 %v1194, %v1189
        %v1199 = vsub.f32 %v1195, %v1190
        %v1200 = vsub.f32 %v1196, %v1191
        %v1201 = vmul.f32 %v1197, 0.5
        %v1202 = vmul.f32 %v1198, 0.5
        %v1203 = vmul.f32 %v1199, 0.5
        %v1204 = vmul.f32 %v1200, 0.5
        %v1205 = vadd.f32 %v1188, %v1201
        %v1206 = vadd.f32 %v1189, %v1202
        %v1207 = vadd.f32 %v1190, %v1203
        %v1208 = vadd.f32 %v1191, %v1204
        %vm1209 = vcmp.ge.f32.partialorder %v1205, 1.0
        %vm1210 = vcmp.ge.f32.partialorder %v1206, 1.0
        %vm1211 = vcmp.ge.f32.partialorder %v1207, 1.0
        %vm1212 = vcmp.ge.f32.partialorder %v1208, 1.0
        %v1213 = vsel %vm1209, 1, 0
        %v1214 = vsel %vm1210, 1, 0
        %v1215 = vsel %vm1211, 1, 0
        %v1216 = vsel %vm1212, 1, 0
        %v1217 = vcvt.s32.f32 %v1213
        %v1218 = vcvt.s32.f32 %v1214
        %v1219 = vcvt.s32.f32 %v1215
        %v1220 = vcvt.s32.f32 %v1216
        %v1221 = vpack.c.bf16 %v1218, %v1217
        %v1222 = vpack.c.bf16 %v1220, %v1219
        %s1223 = scalar_lea.vmem [#allocation3], 32
        %1224 = vst [vmem:[%s1223] sm:$0xff] %v1221
        %1225 = vst [vmem:[%s1223 + $0x8] sm:$0xff] %v1222
        %v1226 = vsel %vm1209, 0.0, %v1205
        %v1227 = vsel %vm1210, 0.0, %v1206
        %v1228 = vsel %vm1211, 0.0, %v1207
        %v1229 = vsel %vm1212, 0.0, %v1208
        %s1230 = scalar_lea.vmem [#allocation2], 96
        %v1231 = vld [vmem:[%s1230] sm:$0xff]
        %v1232 = vld [vmem:[%s1230 + $0x8] sm:$0xff]
        %v1233 = vld [vmem:[%s1230 + $0x10] sm:$0xff]
        %v1234 = vld [vmem:[%s1230 + $0x18] sm:$0xff]
        %v1235 = vsub.f32 %v1231, %v1226
        %v1236 = vsub.f32 %v1232, %v1227
        %v1237 = vsub.f32 %v1233, %v1228
        %v1238 = vsub.f32 %v1234, %v1229
        %v1239 = vmul.f32 %v1235, 0.5
        %v1240 = vmul.f32 %v1236, 0.5
        %v1241 = vmul.f32 %v1237, 0.5
        %v1242 = vmul.f32 %v1238, 0.5
        %v1243 = vadd.f32 %v1226, %v1239
        %v1244 = vadd.f32 %v1227, %v1240
        %v1245 = vadd.f32 %v1228, %v1241
        %v1246 = vadd.f32 %v1229, %v1242
        %vm1247 = vcmp.ge.f32.partialorder %v1243, 1.0
        %vm1248 = vcmp.ge.f32.partialorder %v1244, 1.0
        %vm1249 = vcmp.ge.f32.partialorder %v1245, 1.0
        %vm1250 = vcmp.ge.f32.partialorder %v1246, 1.0
        %v1251 = vsel %vm1247, 1, 0
        %v1252 = vsel %vm1248, 1, 0
        %v1253 = vsel %vm1249, 1, 0
        %v1254 = vsel %vm1250, 1, 0
        %v1255 = vcvt.s32.f32 %v1251
        %v1256 = vcvt.s32.f32 %v1252
        %v1257 = vcvt.s32.f32 %v1253
        %v1258 = vcvt.s32.f32 %v1254
        %v1259 = vpack.c.bf16 %v1256, %v1255
        %v1260 = vpack.c.bf16 %v1258, %v1257
        %s1261 = scalar_lea.vmem [#allocation3], 48
        %1262 = vst [vmem:[%s1261] sm:$0xff] %v1259
        %1263 = vst [vmem:[%s1261 + $0x8] sm:$0xff] %v1260
        %v1264 = vsel %vm1247, 0.0, %v1243
        %v1265 = vsel %vm1248, 0.0, %v1244
        %v1266 = vsel %vm1249, 0.0, %v1245
        %v1267 = vsel %vm1250, 0.0, %v1246
        %s1268 = scalar_lea.vmem [#allocation2], 128
        %v1269 = vld [vmem:[%s1268] sm:$0xff]
        %v1270 = vld [vmem:[%s1268 + $0x8] sm:$0xff]
        %v1271 = vld [vmem:[%s1268 + $0x10] sm:$0xff]
        %v1272 = vld [vmem:[%s1268 + $0x18] sm:$0xff]
        %v1273 = vsub.f32 %v1269, %v1264
        %v1274 = vsub.f32 %v1270, %v1265
        %v1275 = vsub.f32 %v1271, %v1266
        %v1276 = vsub.f32 %v1272, %v1267
        %v1277 = vmul.f32 %v1273, 0.5
        %v1278 = vmul.f32 %v1274, 0.5
        %v1279 = vmul.f32 %v1275, 0.5
        %v1280 = vmul.f32 %v1276, 0.5
        %v1281 = vadd.f32 %v1264, %v1277
        %v1282 = vadd.f32 %v1265, %v1278
        %v1283 = vadd.f32 %v1266, %v1279
        %v1284 = vadd.f32 %v1267, %v1280
        %vm1285 = vcmp.ge.f32.partialorder %v1281, 1.0
        %vm1286 = vcmp.ge.f32.partialorder %v1282, 1.0
        %vm1287 = vcmp.ge.f32.partialorder %v1283, 1.0
        %vm1288 = vcmp.ge.f32.partialorder %v1284, 1.0
        %v1289 = vsel %vm1285, 1, 0
        %v1290 = vsel %vm1286, 1, 0
        %v1291 = vsel %vm1287, 1, 0
        %v1292 = vsel %vm1288, 1, 0
        %v1293 = vcvt.s32.f32 %v1289
        %v1294 = vcvt.s32.f32 %v1290
        %v1295 = vcvt.s32.f32 %v1291
        %v1296 = vcvt.s32.f32 %v1292
        %v1297 = vpack.c.bf16 %v1294, %v1293
        %v1298 = vpack.c.bf16 %v1296, %v1295
        %s1299 = scalar_lea.vmem [#allocation3], 64
        %1300 = vst [vmem:[%s1299] sm:$0xff] %v1297
        %1301 = vst [vmem:[%s1299 + $0x8] sm:$0xff] %v1298
        %v1302 = vsel %vm1285, 0.0, %v1281
        %v1303 = vsel %vm1286, 0.0, %v1282
        %v1304 = vsel %vm1287, 0.0, %v1283
        %v1305 = vsel %vm1288, 0.0, %v1284
        %s1306 = scalar_lea.vmem [#allocation2], 160
        %v1307 = vld [vmem:[%s1306] sm:$0xff]
        %v1308 = vld [vmem:[%s1306 + $0x8] sm:$0xff]
        %v1309 = vld [vmem:[%s1306 + $0x10] sm:$0xff]
        %v1310 = vld [vmem:[%s1306 + $0x18] sm:$0xff]
        %v1311 = vsub.f32 %v1307, %v1302
        %v1312 = vsub.f32 %v1308, %v1303
        %v1313 = vsub.f32 %v1309, %v1304
        %v1314 = vsub.f32 %v1310, %v1305
        %v1315 = vmul.f32 %v1311, 0.5
        %v1316 = vmul.f32 %v1312, 0.5
        %v1317 = vmul.f32 %v1313, 0.5
        %v1318 = vmul.f32 %v1314, 0.5
        %v1319 = vadd.f32 %v1302, %v1315
        %v1320 = vadd.f32 %v1303, %v1316
        %v1321 = vadd.f32 %v1304, %v1317
        %v1322 = vadd.f32 %v1305, %v1318
        %vm1323 = vcmp.ge.f32.partialorder %v1319, 1.0
        %vm1324 = vcmp.ge.f32.partialorder %v1320, 1.0
        %vm1325 = vcmp.ge.f32.partialorder %v1321, 1.0
        %vm1326 = vcmp.ge.f32.partialorder %v1322, 1.0
        %v1327 = vsel %vm1323, 1, 0
        %v1328 = vsel %vm1324, 1, 0
        %v1329 = vsel %vm1325, 1, 0
        %v1330 = vsel %vm1326, 1, 0
        %v1331 = vcvt.s32.f32 %v1327
        %v1332 = vcvt.s32.f32 %v1328
        %v1333 = vcvt.s32.f32 %v1329
        %v1334 = vcvt.s32.f32 %v1330
        %v1335 = vpack.c.bf16 %v1332, %v1331
        %v1336 = vpack.c.bf16 %v1334, %v1333
        %s1337 = scalar_lea.vmem [#allocation3], 80
        %1338 = vst [vmem:[%s1337] sm:$0xff] %v1335
        %1339 = vst [vmem:[%s1337 + $0x8] sm:$0xff] %v1336
        %v1340 = vsel %vm1323, 0.0, %v1319
        %v1341 = vsel %vm1324, 0.0, %v1320
        %v1342 = vsel %vm1325, 0.0, %v1321
        %v1343 = vsel %vm1326, 0.0, %v1322
        %s1344 = scalar_lea.vmem [#allocation2], 192
        %v1345 = vld [vmem:[%s1344] sm:$0xff]
        %v1346 = vld [vmem:[%s1344 + $0x8] sm:$0xff]
        %v1347 = vld [vmem:[%s1344 + $0x10] sm:$0xff]
        %v1348 = vld [vmem:[%s1344 + $0x18] sm:$0xff]
        %v1349 = vsub.f32 %v1345, %v1340
        %v1350 = vsub.f32 %v1346, %v1341
        %v1351 = vsub.f32 %v1347, %v1342
        %v1352 = vsub.f32 %v1348, %v1343
        %v1353 = vmul.f32 %v1349, 0.5
        %v1354 = vmul.f32 %v1350, 0.5
        %v1355 = vmul.f32 %v1351, 0.5
        %v1356 = vmul.f32 %v1352, 0.5
        %v1357 = vadd.f32 %v1340, %v1353
        %v1358 = vadd.f32 %v1341, %v1354
        %v1359 = vadd.f32 %v1342, %v1355
        %v1360 = vadd.f32 %v1343, %v1356
        %vm1361 = vcmp.ge.f32.partialorder %v1357, 1.0
        %vm1362 = vcmp.ge.f32.partialorder %v1358, 1.0
        %vm1363 = vcmp.ge.f32.partialorder %v1359, 1.0
        %vm1364 = vcmp.ge.f32.partialorder %v1360, 1.0
        %v1365 = vsel %vm1361, 1, 0
        %v1366 = vsel %vm1362, 1, 0
        %v1367 = vsel %vm1363, 1, 0
        %v1368 = vsel %vm1364, 1, 0
        %v1369 = vcvt.s32.f32 %v1365
        %v1370 = vcvt.s32.f32 %v1366
        %v1371 = vcvt.s32.f32 %v1367
        %v1372 = vcvt.s32.f32 %v1368
        %v1373 = vpack.c.bf16 %v1370, %v1369
        %v1374 = vpack.c.bf16 %v1372, %v1371
        %s1375 = scalar_lea.vmem [#allocation3], 96
        %1376 = vst [vmem:[%s1375] sm:$0xff] %v1373
        %1377 = vst [vmem:[%s1375 + $0x8] sm:$0xff] %v1374
        %v1378 = vsel %vm1361, 0.0, %v1357
        %v1379 = vsel %vm1362, 0.0, %v1358
        %v1380 = vsel %vm1363, 0.0, %v1359
        %v1381 = vsel %vm1364, 0.0, %v1360
        %s1382 = scalar_lea.vmem [#allocation2], 224
        %v1383 = vld [vmem:[%s1382] sm:$0xff]
        %v1384 = vld [vmem:[%s1382 + $0x8] sm:$0xff]
        %v1385 = vld [vmem:[%s1382 + $0x10] sm:$0xff]
        %v1386 = vld [vmem:[%s1382 + $0x18] sm:$0xff]
        %v1387 = vsub.f32 %v1383, %v1378
        %v1388 = vsub.f32 %v1384, %v1379
        %v1389 = vsub.f32 %v1385, %v1380
        %v1390 = vsub.f32 %v1386, %v1381
        %v1391 = vmul.f32 %v1387, 0.5
        %v1392 = vmul.f32 %v1388, 0.5
        %v1393 = vmul.f32 %v1389, 0.5
        %v1394 = vmul.f32 %v1390, 0.5
        %v1395 = vadd.f32 %v1378, %v1391
        %v1396 = vadd.f32 %v1379, %v1392
        %v1397 = vadd.f32 %v1380, %v1393
        %v1398 = vadd.f32 %v1381, %v1394
        %vm1399 = vcmp.ge.f32.partialorder %v1395, 1.0
        %vm1400 = vcmp.ge.f32.partialorder %v1396, 1.0
        %vm1401 = vcmp.ge.f32.partialorder %v1397, 1.0
        %vm1402 = vcmp.ge.f32.partialorder %v1398, 1.0
        %v1403 = vsel %vm1399, 1, 0
        %v1404 = vsel %vm1400, 1, 0
        %v1405 = vsel %vm1401, 1, 0
        %v1406 = vsel %vm1402, 1, 0
        %v1407 = vcvt.s32.f32 %v1403
        %v1408 = vcvt.s32.f32 %v1404
        %v1409 = vcvt.s32.f32 %v1405
        %v1410 = vcvt.s32.f32 %v1406
        %v1411 = vpack.c.bf16 %v1408, %v1407
        %v1412 = vpack.c.bf16 %v1410, %v1409
        %s1413 = scalar_lea.vmem [#allocation3], 112
        %1414 = vst [vmem:[%s1413] sm:$0xff] %v1411
        %1415 = vst [vmem:[%s1413 + $0x8] sm:$0xff] %v1412
        %v1416 = vsel %vm1399, 0.0, %v1395
        %v1417 = vsel %vm1400, 0.0, %v1396
        %v1418 = vsel %vm1401, 0.0, %v1397
        %v1419 = vsel %vm1402, 0.0, %v1398
        %1420 = vst [vmem:[#allocation5] sm:$0xff] %v1416
        %1421 = vst [vmem:[#allocation5 + $0x8] sm:$0xff] %v1417
        %1422 = vst [vmem:[#allocation5 + $0x10] sm:$0xff] %v1418
        %1423 = vst [vmem:[#allocation5 + $0x18] sm:$0xff] %v1419
        %v1424 = vld [vmem:[#allocation3] sm:$0xff]
        %v1425 = vld [vmem:[#allocation3 + $0x8] sm:$0xff]
        %v1426 = vld [vmem:[#allocation3 + $0x10] sm:$0xff]
        %v1427 = vld [vmem:[#allocation3 + $0x18] sm:$0xff]
        %v1428 = vld [vmem:[#allocation3 + $0x20] sm:$0xff]
        %v1429 = vld [vmem:[#allocation3 + $0x28] sm:$0xff]
        %v1430 = vld [vmem:[#allocation3 + $0x30] sm:$0xff]
        %v1431 = vld [vmem:[#allocation3 + $0x38] sm:$0xff]
        %v1432 = vld [vmem:[#allocation3 + $0x40] sm:$0xff]
        %v1433 = vld [vmem:[#allocation3 + $0x48] sm:$0xff]
        %v1434 = vld [vmem:[#allocation3 + $0x50] sm:$0xff]
        %v1435 = vld [vmem:[#allocation3 + $0x58] sm:$0xff]
        %v1436 = vld [vmem:[#allocation3 + $0x60] sm:$0xff]
        %v1437 = vld [vmem:[#allocation3 + $0x68] sm:$0xff]
        %v1438 = vld [vmem:[#allocation3 + $0x70] sm:$0xff]
        %v1439 = vld [vmem:[#allocation3 + $0x78] sm:$0xff]
        %v1440 = vld [vmem:[#allocation12] sm:$0xf]
        %v1441 = vld [vmem:[#allocation12 + $0x4] sm:$0xf]
        %v1442 = vld [vmem:[#allocation12 + $0x8] sm:$0xf]
        %v1443 = vld [vmem:[#allocation12 + $0xc] sm:$0xf]
        %v1444 = vld [vmem:[#allocation12 + $0x10] sm:$0xf]
        %v1445 = vld [vmem:[#allocation12 + $0x14] sm:$0xf]
        %v1446 = vld [vmem:[#allocation12 + $0x18] sm:$0xf]
        %v1447 = vld [vmem:[#allocation12 + $0x1c] sm:$0xf]
        %v1448 = vld [vmem:[#allocation12 + $0x20] sm:$0xf]
        %v1449 = vld [vmem:[#allocation12 + $0x24] sm:$0xf]
        %v1450 = vld [vmem:[#allocation12 + $0x28] sm:$0xf]
        %v1451 = vld [vmem:[#allocation12 + $0x2c] sm:$0xf]
        %v1452 = vld [vmem:[#allocation12 + $0x30] sm:$0xf]
        %v1453 = vld [vmem:[#allocation12 + $0x34] sm:$0xf]
        %v1454 = vld [vmem:[#allocation12 + $0x38] sm:$0xf]
        %v1455 = vld [vmem:[#allocation12 + $0x3c] sm:$0xf]
        %v1456 = vld [vmem:[#allocation12 + $0x40] sm:$0xf]
        %v1457 = vld [vmem:[#allocation12 + $0x44] sm:$0xf]
        %v1458 = vld [vmem:[#allocation12 + $0x48] sm:$0xf]
        %v1459 = vld [vmem:[#allocation12 + $0x4c] sm:$0xf]
        %v1460 = vld [vmem:[#allocation12 + $0x50] sm:$0xf]
        %v1461 = vld [vmem:[#allocation12 + $0x54] sm:$0xf]
        %v1462 = vld [vmem:[#allocation12 + $0x58] sm:$0xf]
        %v1463 = vld [vmem:[#allocation12 + $0x5c] sm:$0xf]
        %v1464 = vld [vmem:[#allocation12 + $0x60] sm:$0xf]
        %v1465 = vld [vmem:[#allocation12 + $0x64] sm:$0xf]
        %v1466 = vld [vmem:[#allocation12 + $0x68] sm:$0xf]
        %v1467 = vld [vmem:[#allocation12 + $0x6c] sm:$0xf]
        %v1468 = vld [vmem:[#allocation12 + $0x70] sm:$0xf]
        %v1469 = vld [vmem:[#allocation12 + $0x74] sm:$0xf]
        %v1470 = vld [vmem:[#allocation12 + $0x78] sm:$0xf]
        %v1471 = vld [vmem:[#allocation12 + $0x7c] sm:$0xf]
        %v1472 = vperm.slane %v343, 0
        %v1489 = vunpack.c.l.b16 %v1424
        %v1490 = vunpack.c.h.b16 %v1424
        %v1491 = vunpack.c.l.b16 %v1425
        %v1492 = vunpack.c.h.b16 %v1425
        %v1493 = vunpack.c.l.b16 %v1426
        %v1494 = vunpack.c.h.b16 %v1426
        %v1495 = vunpack.c.l.b16 %v1427
        %v1496 = vunpack.c.h.b16 %v1427
        %v1497 = vunpack.c.l.b16 %v1428
        %v1498 = vunpack.c.h.b16 %v1428
        %v1499 = vunpack.c.l.b16 %v1429
        %v1500 = vunpack.c.h.b16 %v1429
        %v1501 = vunpack.c.l.b16 %v1430
        %v1502 = vunpack.c.h.b16 %v1430
        %v1503 = vunpack.c.l.b16 %v1431
        %v1504 = vunpack.c.h.b16 %v1431
        %v1505 = vunpack.c.l.b16 %v1432
        %v1506 = vunpack.c.h.b16 %v1432
        %v1507 = vunpack.c.l.b16 %v1433
        %v1508 = vunpack.c.h.b16 %v1433
        %v1509 = vunpack.c.l.b16 %v1434
        %v1510 = vunpack.c.h.b16 %v1434
        %v1511 = vunpack.c.l.b16 %v1435
        %v1512 = vunpack.c.h.b16 %v1435
        %v1513 = vunpack.c.l.b16 %v1436
        %v1514 = vunpack.c.h.b16 %v1436
        %v1515 = vunpack.c.l.b16 %v1437
        %v1516 = vunpack.c.h.b16 %v1437
        %v1517 = vunpack.c.l.b16 %v1438
        %v1518 = vunpack.c.h.b16 %v1438
        %v1519 = vunpack.c.l.b16 %v1439
        %v1520 = vunpack.c.h.b16 %v1439
        %v1521 = vpack.c.b16 %v1491, %v1489
        %v1522 = vpack.c.b16 %v1492, %v1490
        %v1523 = vpack.c.b16 %v1495, %v1493
        %v1524 = vpack.c.b16 %v1496, %v1494
        %v1525 = vpack.c.b16 %v1499, %v1497
        %v1526 = vpack.c.b16 %v1500, %v1498
        %v1527 = vpack.c.b16 %v1503, %v1501
        %v1528 = vpack.c.b16 %v1504, %v1502
        %v1529 = vpack.c.b16 %v1507, %v1505
        %v1530 = vpack.c.b16 %v1508, %v1506
        %v1531 = vpack.c.b16 %v1511, %v1509
        %v1532 = vpack.c.b16 %v1512, %v1510
        %v1533 = vpack.c.b16 %v1515, %v1513
        %v1534 = vpack.c.b16 %v1516, %v1514
        %v1535 = vpack.c.b16 %v1519, %v1517
        %v1536 = vpack.c.b16 %v1520, %v1518
        %v1585 = vunpack.c.l.b16 %v1440
        %v1586 = vunpack.c.l.b16 %v1441
        %v1587 = vunpack.c.l.b16 %v1442
        %v1588 = vunpack.c.l.b16 %v1443
        %v1589 = vunpack.c.l.b16 %v1444
        %v1590 = vunpack.c.l.b16 %v1445
        %v1591 = vunpack.c.l.b16 %v1446
        %v1592 = vunpack.c.l.b16 %v1447
        %v1593 = vunpack.c.l.b16 %v1448
        %v1594 = vunpack.c.l.b16 %v1449
        %v1595 = vunpack.c.l.b16 %v1450
        %v1596 = vunpack.c.l.b16 %v1451
        %v1597 = vunpack.c.l.b16 %v1452
        %v1598 = vunpack.c.l.b16 %v1453
        %v1599 = vunpack.c.l.b16 %v1454
        %v1600 = vunpack.c.l.b16 %v1455
        %v1601 = vunpack.c.l.b16 %v1456
        %v1602 = vunpack.c.l.b16 %v1457
        %v1603 = vunpack.c.l.b16 %v1458
        %v1604 = vunpack.c.l.b16 %v1459
        %v1605 = vunpack.c.l.b16 %v1460
        %v1606 = vunpack.c.l.b16 %v1461
        %v1607 = vunpack.c.l.b16 %v1462
        %v1608 = vunpack.c.l.b16 %v1463
        %v1609 = vunpack.c.l.b16 %v1464
        %v1610 = vunpack.c.l.b16 %v1465
        %v1611 = vunpack.c.l.b16 %v1466
        %v1612 = vunpack.c.l.b16 %v1467
        %v1613 = vunpack.c.l.b16 %v1468
        %v1614 = vunpack.c.l.b16 %v1469
        %v1615 = vunpack.c.l.b16 %v1470
        %v1616 = vunpack.c.l.b16 %v1471
        %v1617 = vpack.c.b16 %v1586, %v1585
        %v1618 = vpack.c.b16 %v1588, %v1587
        %v1619 = vpack.c.b16 %v1590, %v1589
        %v1620 = vpack.c.b16 %v1592, %v1591
        %v1621 = vpack.c.b16 %v1594, %v1593
        %v1622 = vpack.c.b16 %v1596, %v1595
        %v1623 = vpack.c.b16 %v1598, %v1597
        %v1624 = vpack.c.b16 %v1600, %v1599
        %v1625 = vpack.c.b16 %v1602, %v1601
        %v1626 = vpack.c.b16 %v1604, %v1603
        %v1627 = vpack.c.b16 %v1606, %v1605
        %v1628 = vpack.c.b16 %v1608, %v1607
        %v1629 = vpack.c.b16 %v1610, %v1609
        %v1630 = vpack.c.b16 %v1612, %v1611
        %v1631 = vpack.c.b16 %v1614, %v1613
        %v1632 = vpack.c.b16 %v1616, %v1615
        %1649 = vmatpush.bf16.msra.mxu0 %v1624
        %1650 = vmatpush.bf16.msra.mxu0 %v1623
        %1651 = vmatpush.bf16.msra.mxu0 %v1622
        %1652 = vmatpush.bf16.msra.mxu0 %v1621
        %1653 = vmatpush.bf16.msra.mxu0 %v1620
        %1654 = vmatpush.bf16.msra.mxu0 %v1619
        %1655 = vmatpush.bf16.msra.mxu0 %v1618
        %1656 = vmatpush.bf16.msra.mxu0 %v1617
        %1657 = vmatmul.bf16.gmra.mxu0 %v1521
        %v1658 = vpop.f32.mrf.mxu0
        %v1659 = vadd.f32 %v1472, %v1658
        %v1660 = vpop.f32.mrf.mxu0
        %v1661 = vadd.f32 %v1472, %v1660
        %1662 = vmatmul.bf16.gmra.mxu0 %v1523
        %v1663 = vpop.f32.mrf.mxu0
        %v1664 = vadd.f32 %v1472, %v1663
        %v1665 = vpop.f32.mrf.mxu0
        %v1666 = vadd.f32 %v1472, %v1665
        %1667 = vmatmul.bf16.gmra.mxu0 %v1525
        %v1668 = vpop.f32.mrf.mxu0
        %v1669 = vadd.f32 %v1472, %v1668
        %v1670 = vpop.f32.mrf.mxu0
        %v1671 = vadd.f32 %v1472, %v1670
        %1672 = vmatmul.bf16.gmra.mxu0 %v1527
        %v1673 = vpop.f32.mrf.mxu0
        %v1674 = vadd.f32 %v1472, %v1673
        %v1675 = vpop.f32.mrf.mxu0
        %v1676 = vadd.f32 %v1472, %v1675
        %1677 = vmatmul.bf16.gmra.mxu0 %v1529
        %v1678 = vpop.f32.mrf.mxu0
        %v1679 = vadd.f32 %v1472, %v1678
        %v1680 = vpop.f32.mrf.mxu0
        %v1681 = vadd.f32 %v1472, %v1680
        %1682 = vmatmul.bf16.gmra.mxu0 %v1531
        %v1683 = vpop.f32.mrf.mxu0
        %v1684 = vadd.f32 %v1472, %v1683
        %v1685 = vpop.f32.mrf.mxu0
        %v1686 = vadd.f32 %v1472, %v1685
        %1687 = vmatmul.bf16.gmra.mxu0 %v1533
        %v1688 = vpop.f32.mrf.mxu0
        %v1689 = vadd.f32 %v1472, %v1688
        %v1690 = vpop.f32.mrf.mxu0
        %v1691 = vadd.f32 %v1472, %v1690
        %1692 = vmatmul.bf16.gmra.mxu0 %v1535
        %v1693 = vpop.f32.mrf.mxu0
        %v1694 = vadd.f32 %v1472, %v1693
        %v1695 = vpop.f32.mrf.mxu0
        %v1696 = vadd.f32 %v1472, %v1695
        %1697 = vdwg.mxu0
        %1698 = vmatpush.bf16.msra.mxu0 %v1632
        %1699 = vmatpush.bf16.msra.mxu0 %v1631
        %1700 = vmatpush.bf16.msra.mxu0 %v1630
        %1701 = vmatpush.bf16.msra.mxu0 %v1629
        %1702 = vmatpush.bf16.msra.mxu0 %v1628
        %1703 = vmatpush.bf16.msra.mxu0 %v1627
        %1704 = vmatpush.bf16.msra.mxu0 %v1626
        %1705 = vmatpush.bf16.msra.mxu0 %v1625
        %1706 = vmatmul.bf16.gmra.mxu0 %v1522
        %v1707 = vpop.f32.mrf.mxu0
        %v1708 = vadd.f32 %v1659, %v1707
        %v1709 = vpop.f32.mrf.mxu0
        %v1710 = vadd.f32 %v1661, %v1709
        %1711 = vmatmul.bf16.gmra.mxu0 %v1524
        %v1712 = vpop.f32.mrf.mxu0
        %v1713 = vadd.f32 %v1664, %v1712
        %v1714 = vpop.f32.mrf.mxu0
        %v1715 = vadd.f32 %v1666, %v1714
        %1716 = vmatmul.bf16.gmra.mxu0 %v1526
        %v1717 = vpop.f32.mrf.mxu0
        %v1718 = vadd.f32 %v1669, %v1717
        %v1719 = vpop.f32.mrf.mxu0
        %v1720 = vadd.f32 %v1671, %v1719
        %1721 = vmatmul.bf16.gmra.mxu0 %v1528
        %v1722 = vpop.f32.mrf.mxu0
        %v1723 = vadd.f32 %v1674, %v1722
        %v1724 = vpop.f32.mrf.mxu0
        %v1725 = vadd.f32 %v1676, %v1724
        %1726 = vmatmul.bf16.gmra.mxu0 %v1530
        %v1727 = vpop.f32.mrf.mxu0
        %v1728 = vadd.f32 %v1679, %v1727
        %v1729 = vpop.f32.mrf.mxu0
        %v1730 = vadd.f32 %v1681, %v1729
        %1731 = vmatmul.bf16.gmra.mxu0 %v1532
        %v1732 = vpop.f32.mrf.mxu0
        %v1733 = vadd.f32 %v1684, %v1732
        %v1734 = vpop.f32.mrf.mxu0
        %v1735 = vadd.f32 %v1686, %v1734
        %1736 = vmatmul.bf16.gmra.mxu0 %v1534
        %v1737 = vpop.f32.mrf.mxu0
        %v1738 = vadd.f32 %v1689, %v1737
        %v1739 = vpop.f32.mrf.mxu0
        %v1740 = vadd.f32 %v1691, %v1739
        %1741 = vmatmul.bf16.gmra.mxu0 %v1536
        %v1742 = vpop.f32.mrf.mxu0
        %v1743 = vadd.f32 %v1694, %v1742
        %v1744 = vpop.f32.mrf.mxu0
        %v1745 = vadd.f32 %v1696, %v1744
        %1746 = vdwg.mxu0
        %1747 = vadd.xlane.f32.xlu0 %v1708
        %v1748 = vpop.xlane.xlu0 %1747
        %1749 = vadd.xlane.f32.xlu0 %v1710
        %v1750 = vpop.xlane.xlu0 %1749
        %1751 = vadd.xlane.f32.xlu0 %v1713
        %v1752 = vpop.xlane.xlu0 %1751
        %1753 = vadd.xlane.f32.xlu0 %v1715
        %v1754 = vpop.xlane.xlu0 %1753
        %1755 = vadd.xlane.f32.xlu0 %v1718
        %v1756 = vpop.xlane.xlu0 %1755
        %1757 = vadd.xlane.f32.xlu0 %v1720
        %v1758 = vpop.xlane.xlu0 %1757
        %1759 = vadd.xlane.f32.xlu0 %v1723
        %v1760 = vpop.xlane.xlu0 %1759
        %1761 = vadd.xlane.f32.xlu0 %v1725
        %v1762 = vpop.xlane.xlu0 %1761
        %1763 = vadd.xlane.f32.xlu0 %v1728
        %v1764 = vpop.xlane.xlu0 %1763
        %1765 = vadd.xlane.f32.xlu0 %v1730
        %v1766 = vpop.xlane.xlu0 %1765
        %1767 = vadd.xlane.f32.xlu0 %v1733
        %v1768 = vpop.xlane.xlu0 %1767
        %1769 = vadd.xlane.f32.xlu0 %v1735
        %v1770 = vpop.xlane.xlu0 %1769
        %1771 = vadd.xlane.f32.xlu0 %v1738
        %v1772 = vpop.xlane.xlu0 %1771
        %1773 = vadd.xlane.f32.xlu0 %v1740
        %v1774 = vpop.xlane.xlu0 %1773
        %1775 = vadd.xlane.f32.xlu0 %v1743
        %v1776 = vpop.xlane.xlu0 %1775
        %1777 = vadd.xlane.f32.xlu0 %v1745
        %v1778 = vpop.xlane.xlu0 %1777
        %v1779 = vrcp.pop 128.0
        %v1780 = vmul.f32 128.0, %v1779
        %v1781 = vsub.f32 1.0, %v1780
        %v1782 = vmul.f32 %v1779, %v1781
        %v1783 = vadd.f32 %v1779, %v1782
        %vm1784 = vweird.f32 %v1779
        %v1785 = vsel %vm1784, %v1779, %v1783
        %v1786 = vmul.f32 %v1748, %v1785
        %v1787 = vmul.f32 %v1750, %v1785
        %v1788 = vmul.f32 %v1752, %v1785
        %v1789 = vmul.f32 %v1754, %v1785
        %v1790 = vmul.f32 %v1756, %v1785
        %v1791 = vmul.f32 %v1758, %v1785
        %v1792 = vmul.f32 %v1760, %v1785
        %v1793 = vmul.f32 %v1762, %v1785
        %v1794 = vmul.f32 %v1764, %v1785
        %v1795 = vmul.f32 %v1766, %v1785
        %v1796 = vmul.f32 %v1768, %v1785
        %v1797 = vmul.f32 %v1770, %v1785
        %v1798 = vmul.f32 %v1772, %v1785
        %v1799 = vmul.f32 %v1774, %v1785
        %v1800 = vmul.f32 %v1776, %v1785
        %v1801 = vmul.f32 %v1778, %v1785
        %v1802 = vmul.f32 %v1708, %v1708
        %v1803 = vmul.f32 %v1710, %v1710
        %v1804 = vmul.f32 %v1713, %v1713
        %v1805 = vmul.f32 %v1715, %v1715
        %v1806 = vmul.f32 %v1718, %v1718
        %v1807 = vmul.f32 %v1720, %v1720
        %v1808 = vmul.f32 %v1723, %v1723
        %v1809 = vmul.f32 %v1725, %v1725
        %v1810 = vmul.f32 %v1728, %v1728
        %v1811 = vmul.f32 %v1730, %v1730
        %v1812 = vmul.f32 %v1733, %v1733
        %v1813 = vmul.f32 %v1735, %v1735
        %v1814 = vmul.f32 %v1738, %v1738
        %v1815 = vmul.f32 %v1740, %v1740
        %v1816 = vmul.f32 %v1743, %v1743
        %v1817 = vmul.f32 %v1745, %v1745
        %1818 = vadd.xlane.f32.xlu0 %v1802
        %v1819 = vpop.xlane.xlu0 %1818
        %1820 = vadd.xlane.f32.xlu0 %v1803
        %v1821 = vpop.xlane.xlu0 %1820
        %1822 = vadd.xlane.f32.xlu0 %v1804
        %v1823 = vpop.xlane.xlu0 %1822
        %1824 = vadd.xlane.f32.xlu0 %v1805
        %v1825 = vpop.xlane.xlu0 %1824
        %1826 = vadd.xlane.f32.xlu0 %v1806
        %v1827 = vpop.xlane.xlu0 %1826
        %1828 = vadd.xlane.f32.xlu0 %v1807
        %v1829 = vpop.xlane.xlu0 %1828
        %1830 = vadd.xlane.f32.xlu0 %v1808
        %v1831 = vpop.xlane.xlu0 %1830
        %1832 = vadd.xlane.f32.xlu0 %v1809
        %v1833 = vpop.xlane.xlu0 %1832
        %1834 = vadd.xlane.f32.xlu0 %v1810
        %v1835 = vpop.xlane.xlu0 %1834
        %1836 = vadd.xlane.f32.xlu0 %v1811
        %v1837 = vpop.xlane.xlu0 %1836
        %1838 = vadd.xlane.f32.xlu0 %v1812
        %v1839 = vpop.xlane.xlu0 %1838
        %1840 = vadd.xlane.f32.xlu0 %v1813
        %v1841 = vpop.xlane.xlu0 %1840
        %1842 = vadd.xlane.f32.xlu0 %v1814
        %v1843 = vpop.xlane.xlu0 %1842
        %1844 = vadd.xlane.f32.xlu0 %v1815
        %v1845 = vpop.xlane.xlu0 %1844
        %1846 = vadd.xlane.f32.xlu0 %v1816
        %v1847 = vpop.xlane.xlu0 %1846
        %1848 = vadd.xlane.f32.xlu0 %v1817
        %v1849 = vpop.xlane.xlu0 %1848
        %v1850 = vmul.f32 %v1819, %v1785
        %v1851 = vmul.f32 %v1821, %v1785
        %v1852 = vmul.f32 %v1823, %v1785
        %v1853 = vmul.f32 %v1825, %v1785
        %v1854 = vmul.f32 %v1827, %v1785
        %v1855 = vmul.f32 %v1829, %v1785
        %v1856 = vmul.f32 %v1831, %v1785
        %v1857 = vmul.f32 %v1833, %v1785
        %v1858 = vmul.f32 %v1835, %v1785
        %v1859 = vmul.f32 %v1837, %v1785
        %v1860 = vmul.f32 %v1839, %v1785
        %v1861 = vmul.f32 %v1841, %v1785
        %v1862 = vmul.f32 %v1843, %v1785
        %v1863 = vmul.f32 %v1845, %v1785
        %v1864 = vmul.f32 %v1847, %v1785
        %v1865 = vmul.f32 %v1849, %v1785
        %v1866 = vmul.f32 %v1786, %v1786
        %v1867 = vmul.f32 %v1787, %v1787
        %v1868 = vmul.f32 %v1788, %v1788
        %v1869 = vmul.f32 %v1789, %v1789
        %v1870 = vmul.f32 %v1790, %v1790
        %v1871 = vmul.f32 %v1791, %v1791
        %v1872 = vmul.f32 %v1792, %v1792
        %v1873 = vmul.f32 %v1793, %v1793
        %v1874 = vmul.f32 %v1794, %v1794
        %v1875 = vmul.f32 %v1795, %v1795
        %v1876 = vmul.f32 %v1796, %v1796
        %v1877 = vmul.f32 %v1797, %v1797
        %v1878 = vmul.f32 %v1798, %v1798
        %v1879 = vmul.f32 %v1799, %v1799
        %v1880 = vmul.f32 %v1800, %v1800
        %v1881 = vmul.f32 %v1801, %v1801
        %v1882 = vsub.f32 %v1850, %v1866
        %v1883 = vsub.f32 %v1851, %v1867
        %v1884 = vsub.f32 %v1852, %v1868
        %v1885 = vsub.f32 %v1853, %v1869
        %v1886 = vsub.f32 %v1854, %v1870
        %v1887 = vsub.f32 %v1855, %v1871
        %v1888 = vsub.f32 %v1856, %v1872
        %v1889 = vsub.f32 %v1857, %v1873
        %v1890 = vsub.f32 %v1858, %v1874
        %v1891 = vsub.f32 %v1859, %v1875
        %v1892 = vsub.f32 %v1860, %v1876
        %v1893 = vsub.f32 %v1861, %v1877
        %v1894 = vsub.f32 %v1862, %v1878
        %v1895 = vsub.f32 %v1863, %v1879
        %v1896 = vsub.f32 %v1864, %v1880
        %v1897 = vsub.f32 %v1865, %v1881
        %v1898 = vsub.f32 %v1708, %v1786
        %v1899 = vsub.f32 %v1710, %v1787
        %v1900 = vsub.f32 %v1713, %v1788
        %v1901 = vsub.f32 %v1715, %v1789
        %v1902 = vsub.f32 %v1718, %v1790
        %v1903 = vsub.f32 %v1720, %v1791
        %v1904 = vsub.f32 %v1723, %v1792
        %v1905 = vsub.f32 %v1725, %v1793
        %v1906 = vsub.f32 %v1728, %v1794
        %v1907 = vsub.f32 %v1730, %v1795
        %v1908 = vsub.f32 %v1733, %v1796
        %v1909 = vsub.f32 %v1735, %v1797
        %v1910 = vsub.f32 %v1738, %v1798
        %v1911 = vsub.f32 %v1740, %v1799
        %v1912 = vsub.f32 %v1743, %v1800
        %v1913 = vsub.f32 %v1745, %v1801
        %v1914 = vadd.f32 %v1882, 1e-05
        %v1915 = vadd.f32 %v1883, 1e-05
        %v1916 = vadd.f32 %v1884, 1e-05
        %v1917 = vadd.f32 %v1885, 1e-05
        %v1918 = vadd.f32 %v1886, 1e-05
        %v1919 = vadd.f32 %v1887, 1e-05
        %v1920 = vadd.f32 %v1888, 1e-05
        %v1921 = vadd.f32 %v1889, 1e-05
        %v1922 = vadd.f32 %v1890, 1e-05
        %v1923 = vadd.f32 %v1891, 1e-05
        %v1924 = vadd.f32 %v1892, 1e-05
        %v1925 = vadd.f32 %v1893, 1e-05
        %v1926 = vadd.f32 %v1894, 1e-05
        %v1927 = vadd.f32 %v1895, 1e-05
        %v1928 = vadd.f32 %v1896, 1e-05
        %v1929 = vadd.f32 %v1897, 1e-05
        %v1930 = vrsqrt.pop %v1914
        %v1931 = vmul.f32 %v1930, %v1914
        %v1932 = vmul.f32 %v1931, %v1930
        %v1933 = vmul.f32 0.5, %v1932
        %v1934 = vsub.f32 1.5, %v1933
        %v1935 = vmul.f32 %v1930, %v1934
        %vm1936 = vweird.f32 %v1914
        %vm1937 = vweird.f32 %v1930
        %vm1938 = vmor %vm1936, %vm1937
        %v1939 = vsel %vm1938, %v1930, %v1935
        %v1940 = vrsqrt.pop %v1915
        %v1941 = vmul.f32 %v1940, %v1915
        %v1942 = vmul.f32 %v1941, %v1940
        %v1943 = vmul.f32 0.5, %v1942
        %v1944 = vsub.f32 1.5, %v1943
        %v1945 = vmul.f32 %v1940, %v1944
        %vm1946 = vweird.f32 %v1915
        %vm1947 = vweird.f32 %v1940
        %vm1948 = vmor %vm1946, %vm1947
        %v1949 = vsel %vm1948, %v1940, %v1945
        %v1950 = vrsqrt.pop %v1916
        %v1951 = vmul.f32 %v1950, %v1916
        %v1952 = vmul.f32 %v1951, %v1950
        %v1953 = vmul.f32 0.5, %v1952
        %v1954 = vsub.f32 1.5, %v1953
        %v1955 = vmul.f32 %v1950, %v1954
        %vm1956 = vweird.f32 %v1916
        %vm1957 = vweird.f32 %v1950
        %vm1958 = vmor %vm1956, %vm1957
        %v1959 = vsel %vm1958, %v1950, %v1955
        %v1960 = vrsqrt.pop %v1917
        %v1961 = vmul.f32 %v1960, %v1917
        %v1962 = vmul.f32 %v1961, %v1960
        %v1963 = vmul.f32 0.5, %v1962
        %v1964 = vsub.f32 1.5, %v1963
        %v1965 = vmul.f32 %v1960, %v1964
        %vm1966 = vweird.f32 %v1917
        %vm1967 = vweird.f32 %v1960
        %vm1968 = vmor %vm1966, %vm1967
        %v1969 = vsel %vm1968, %v1960, %v1965
        %v1970 = vrsqrt.pop %v1918
        %v1971 = vmul.f32 %v1970, %v1918
        %v1972 = vmul.f32 %v1971, %v1970
        %v1973 = vmul.f32 0.5, %v1972
        %v1974 = vsub.f32 1.5, %v1973
        %v1975 = vmul.f32 %v1970, %v1974
        %vm1976 = vweird.f32 %v1918
        %vm1977 = vweird.f32 %v1970
        %vm1978 = vmor %vm1976, %vm1977
        %v1979 = vsel %vm1978, %v1970, %v1975
        %v1980 = vrsqrt.pop %v1919
        %v1981 = vmul.f32 %v1980, %v1919
        %v1982 = vmul.f32 %v1981, %v1980
        %v1983 = vmul.f32 0.5, %v1982
        %v1984 = vsub.f32 1.5, %v1983
        %v1985 = vmul.f32 %v1980, %v1984
        %vm1986 = vweird.f32 %v1919
        %vm1987 = vweird.f32 %v1980
        %vm1988 = vmor %vm1986, %vm1987
        %v1989 = vsel %vm1988, %v1980, %v1985
        %v1990 = vrsqrt.pop %v1920
        %v1991 = vmul.f32 %v1990, %v1920
        %v1992 = vmul.f32 %v1991, %v1990
        %v1993 = vmul.f32 0.5, %v1992
        %v1994 = vsub.f32 1.5, %v1993
        %v1995 = vmul.f32 %v1990, %v1994
        %vm1996 = vweird.f32 %v1920
        %vm1997 = vweird.f32 %v1990
        %vm1998 = vmor %vm1996, %vm1997
        %v1999 = vsel %vm1998, %v1990, %v1995
        %v2000 = vrsqrt.pop %v1921
        %v2001 = vmul.f32 %v2000, %v1921
        %v2002 = vmul.f32 %v2001, %v2000
        %v2003 = vmul.f32 0.5, %v2002
        %v2004 = vsub.f32 1.5, %v2003
        %v2005 = vmul.f32 %v2000, %v2004
        %vm2006 = vweird.f32 %v1921
        %vm2007 = vweird.f32 %v2000
        %vm2008 = vmor %vm2006, %vm2007
        %v2009 = vsel %vm2008, %v2000, %v2005
        %v2010 = vrsqrt.pop %v1922
        %v2011 = vmul.f32 %v2010, %v1922
        %v2012 = vmul.f32 %v2011, %v2010
        %v2013 = vmul.f32 0.5, %v2012
        %v2014 = vsub.f32 1.5, %v2013
        %v2015 = vmul.f32 %v2010, %v2014
        %vm2016 = vweird.f32 %v1922
        %vm2017 = vweird.f32 %v2010
        %vm2018 = vmor %vm2016, %vm2017
        %v2019 = vsel %vm2018, %v2010, %v2015
        %v2020 = vrsqrt.pop %v1923
        %v2021 = vmul.f32 %v2020, %v1923
        %v2022 = vmul.f32 %v2021, %v2020
        %v2023 = vmul.f32 0.5, %v2022
        %v2024 = vsub.f32 1.5, %v2023
        %v2025 = vmul.f32 %v2020, %v2024
        %vm2026 = vweird.f32 %v1923
        %vm2027 = vweird.f32 %v2020
        %vm2028 = vmor %vm2026, %vm2027
        %v2029 = vsel %vm2028, %v2020, %v2025
        %v2030 = vrsqrt.pop %v1924
        %v2031 = vmul.f32 %v2030, %v1924
        %v2032 = vmul.f32 %v2031, %v2030
        %v2033 = vmul.f32 0.5, %v2032
        %v2034 = vsub.f32 1.5, %v2033
        %v2035 = vmul.f32 %v2030, %v2034
        %vm2036 = vweird.f32 %v1924
        %vm2037 = vweird.f32 %v2030
        %vm2038 = vmor %vm2036, %vm2037
        %v2039 = vsel %vm2038, %v2030, %v2035
        %v2040 = vrsqrt.pop %v1925
        %v2041 = vmul.f32 %v2040, %v1925
        %v2042 = vmul.f32 %v2041, %v2040
        %v2043 = vmul.f32 0.5, %v2042
        %v2044 = vsub.f32 1.5, %v2043
        %v2045 = vmul.f32 %v2040, %v2044
        %vm2046 = vweird.f32 %v1925
        %vm2047 = vweird.f32 %v2040
        %vm2048 = vmor %vm2046, %vm2047
        %v2049 = vsel %vm2048, %v2040, %v2045
        %v2050 = vrsqrt.pop %v1926
        %v2051 = vmul.f32 %v2050, %v1926
        %v2052 = vmul.f32 %v2051, %v2050
        %v2053 = vmul.f32 0.5, %v2052
        %v2054 = vsub.f32 1.5, %v2053
        %v2055 = vmul.f32 %v2050, %v2054
        %vm2056 = vweird.f32 %v1926
        %vm2057 = vweird.f32 %v2050
        %vm2058 = vmor %vm2056, %vm2057
        %v2059 = vsel %vm2058, %v2050, %v2055
        %v2060 = vrsqrt.pop %v1927
        %v2061 = vmul.f32 %v2060, %v1927
        %v2062 = vmul.f32 %v2061, %v2060
        %v2063 = vmul.f32 0.5, %v2062
        %v2064 = vsub.f32 1.5, %v2063
        %v2065 = vmul.f32 %v2060, %v2064
        %vm2066 = vweird.f32 %v1927
        %vm2067 = vweird.f32 %v2060
        %vm2068 = vmor %vm2066, %vm2067
        %v2069 = vsel %vm2068, %v2060, %v2065
        %v2070 = vrsqrt.pop %v1928
        %v2071 = vmul.f32 %v2070, %v1928
        %v2072 = vmul.f32 %v2071, %v2070
        %v2073 = vmul.f32 0.5, %v2072
        %v2074 = vsub.f32 1.5, %v2073
        %v2075 = vmul.f32 %v2070, %v2074
        %vm2076 = vweird.f32 %v1928
        %vm2077 = vweird.f32 %v2070
        %vm2078 = vmor %vm2076, %vm2077
        %v2079 = vsel %vm2078, %v2070, %v2075
        %v2080 = vrsqrt.pop %v1929
        %v2081 = vmul.f32 %v2080, %v1929
        %v2082 = vmul.f32 %v2081, %v2080
        %v2083 = vmul.f32 0.5, %v2082
        %v2084 = vsub.f32 1.5, %v2083
        %v2085 = vmul.f32 %v2080, %v2084
        %vm2086 = vweird.f32 %v1929
        %vm2087 = vweird.f32 %v2080
        %vm2088 = vmor %vm2086, %vm2087
        %v2089 = vsel %vm2088, %v2080, %v2085
        %v2090 = vmul.f32 %v1898, %v1939
        %v2091 = vmul.f32 %v1899, %v1949
        %v2092 = vmul.f32 %v1900, %v1959
        %v2093 = vmul.f32 %v1901, %v1969
        %v2094 = vmul.f32 %v1902, %v1979
        %v2095 = vmul.f32 %v1903, %v1989
        %v2096 = vmul.f32 %v1904, %v1999
        %v2097 = vmul.f32 %v1905, %v2009
        %v2098 = vmul.f32 %v1906, %v2019
        %v2099 = vmul.f32 %v1907, %v2029
        %v2100 = vmul.f32 %v1908, %v2039
        %v2101 = vmul.f32 %v1909, %v2049
        %v2102 = vmul.f32 %v1910, %v2059
        %v2103 = vmul.f32 %v1911, %v2069
        %v2104 = vmul.f32 %v1912, %v2079
        %v2105 = vmul.f32 %v1913, %v2089
        %v2106 = vperm.slane %v344, 0
        %v2107 = vmul.f32 %v2090, %v2106
        %v2108 = vmul.f32 %v2091, %v2106
        %v2109 = vmul.f32 %v2092, %v2106
        %v2110 = vmul.f32 %v2093, %v2106
        %v2111 = vmul.f32 %v2094, %v2106
        %v2112 = vmul.f32 %v2095, %v2106
        %v2113 = vmul.f32 %v2096, %v2106
        %v2114 = vmul.f32 %v2097, %v2106
        %v2115 = vmul.f32 %v2098, %v2106
        %v2116 = vmul.f32 %v2099, %v2106
        %v2117 = vmul.f32 %v2100, %v2106
        %v2118 = vmul.f32 %v2101, %v2106
        %v2119 = vmul.f32 %v2102, %v2106
        %v2120 = vmul.f32 %v2103, %v2106
        %v2121 = vmul.f32 %v2104, %v2106
        %v2122 = vmul.f32 %v2105, %v2106
        %v2123 = vperm.slane %v345, 0
        %v2124 = vadd.f32 %v2107, %v2123
        %v2125 = vadd.f32 %v2108, %v2123
        %v2126 = vadd.f32 %v2109, %v2123
        %v2127 = vadd.f32 %v2110, %v2123
        %v2128 = vadd.f32 %v2111, %v2123
        %v2129 = vadd.f32 %v2112, %v2123
        %v2130 = vadd.f32 %v2113, %v2123
        %v2131 = vadd.f32 %v2114, %v2123
        %v2132 = vadd.f32 %v2115, %v2123
        %v2133 = vadd.f32 %v2116, %v2123
        %v2134 = vadd.f32 %v2117, %v2123
        %v2135 = vadd.f32 %v2118, %v2123
        %v2136 = vadd.f32 %v2119, %v2123
        %v2137 = vadd.f32 %v2120, %v2123
        %v2138 = vadd.f32 %v2121, %v2123
        %v2139 = vadd.f32 %v2122, %v2123
        %2140 = vst [vmem:[#allocation4] sm:$0xff] %v2124
        %2141 = vst [vmem:[#allocation4 + $0x8] sm:$0xff] %v2125
        %2142 = vst [vmem:[#allocation4 + $0x10] sm:$0xff] %v2126
        %2143 = vst [vmem:[#allocation4 + $0x18] sm:$0xff] %v2127
        %2144 = vst [vmem:[#allocation4 + $0x20] sm:$0xff] %v2128
        %2145 = vst [vmem:[#allocation4 + $0x28] sm:$0xff] %v2129
        %2146 = vst [vmem:[#allocation4 + $0x30] sm:$0xff] %v2130
        %2147 = vst [vmem:[#allocation4 + $0x38] sm:$0xff] %v2131
        %2148 = vst [vmem:[#allocation4 + $0x40] sm:$0xff] %v2132
        %2149 = vst [vmem:[#allocation4 + $0x48] sm:$0xff] %v2133
        %2150 = vst [vmem:[#allocation4 + $0x50] sm:$0xff] %v2134
        %2151 = vst [vmem:[#allocation4 + $0x58] sm:$0xff] %v2135
        %2152 = vst [vmem:[#allocation4 + $0x60] sm:$0xff] %v2136
        %2153 = vst [vmem:[#allocation4 + $0x68] sm:$0xff] %v2137
        %2154 = vst [vmem:[#allocation4 + $0x70] sm:$0xff] %v2138
        %2155 = vst [vmem:[#allocation4 + $0x78] sm:$0xff] %v2139
        %v2156 = vld [vmem:[#allocation6] sm:$0xff]
        %v2157 = vld [vmem:[#allocation6 + $0x8] sm:$0xff]
        %v2158 = vld [vmem:[#allocation4] sm:$0xff]
        %v2159 = vld [vmem:[#allocation4 + $0x8] sm:$0xff]
        %v2160 = vsub.f32 %v2158, %v2156
        %v2161 = vsub.f32 %v2159, %v2157
        %v2162 = vmul.f32 %v2160, 0.5
        %v2163 = vmul.f32 %v2161, 0.5
        %v2164 = vadd.f32 %v2156, %v2162
        %v2165 = vadd.f32 %v2157, %v2163
        %vm2166 = vcmp.ge.f32.partialorder %v2164, 1.0
        %vm2167 = vcmp.ge.f32.partialorder %v2165, 1.0
        %v2168 = vsel %vm2166, 1, 0
        %v2169 = vsel %vm2167, 1, 0
        %v2170 = vcvt.s32.f32 %v2168
        %v2171 = vcvt.s32.f32 %v2169
        %v2172 = vpack.c.bf16 %v2170, %v2170
        %v2173 = vpack.c.bf16 %v2171, %v2171
        %2174 = vst [vmem:[%s325] sm:$0xf] %v2172
        %2175 = vst [vmem:[%s325 + $0x4] sm:$0xf] %v2173
        %v2176 = vsel %vm2166, 0.0, %v2164
        %v2177 = vsel %vm2167, 0.0, %v2165
        %s2178 = scalar_lea.vmem [#allocation4], 16
        %v2179 = vld [vmem:[%s2178] sm:$0xff]
        %v2180 = vld [vmem:[%s2178 + $0x8] sm:$0xff]
        %v2181 = vsub.f32 %v2179, %v2176
        %v2182 = vsub.f32 %v2180, %v2177
        %v2183 = vmul.f32 %v2181, 0.5
        %v2184 = vmul.f32 %v2182, 0.5
        %v2185 = vadd.f32 %v2176, %v2183
        %v2186 = vadd.f32 %v2177, %v2184
        %vm2187 = vcmp.ge.f32.partialorder %v2185, 1.0
        %vm2188 = vcmp.ge.f32.partialorder %v2186, 1.0
        %v2189 = vsel %vm2187, 1, 0
        %v2190 = vsel %vm2188, 1, 0
        %v2191 = vcvt.s32.f32 %v2189
        %v2192 = vcvt.s32.f32 %v2190
        %v2193 = vpack.c.bf16 %v2191, %v2191
        %v2194 = vpack.c.bf16 %v2192, %v2192
        %s2195 = scalar_lea.vmem %s325, 8 [#allocation16]
        %2196 = vst [vmem:[%s2195] sm:$0xf] %v2193
        %2197 = vst [vmem:[%s2195 + $0x4] sm:$0xf] %v2194
        %v2198 = vsel %vm2187, 0.0, %v2185
        %v2199 = vsel %vm2188, 0.0, %v2186
        %s2200 = scalar_lea.vmem [#allocation4], 32
        %v2201 = vld [vmem:[%s2200] sm:$0xff]
        %v2202 = vld [vmem:[%s2200 + $0x8] sm:$0xff]
        %v2203 = vsub.f32 %v2201, %v2198
        %v2204 = vsub.f32 %v2202, %v2199
        %v2205 = vmul.f32 %v2203, 0.5
        %v2206 = vmul.f32 %v2204, 0.5
        %v2207 = vadd.f32 %v2198, %v2205
        %v2208 = vadd.f32 %v2199, %v2206
        %vm2209 = vcmp.ge.f32.partialorder %v2207, 1.0
        %vm2210 = vcmp.ge.f32.partialorder %v2208, 1.0
        %v2211 = vsel %vm2209, 1, 0
        %v2212 = vsel %vm2210, 1, 0
        %v2213 = vcvt.s32.f32 %v2211
        %v2214 = vcvt.s32.f32 %v2212
        %v2215 = vpack.c.bf16 %v2213, %v2213
        %v2216 = vpack.c.bf16 %v2214, %v2214
        %s2217 = scalar_lea.vmem %s325, 16 [#allocation16]
        %2218 = vst [vmem:[%s2217] sm:$0xf] %v2215
        %2219 = vst [vmem:[%s2217 + $0x4] sm:$0xf] %v2216
        %v2220 = vsel %vm2209, 0.0, %v2207
        %v2221 = vsel %vm2210, 0.0, %v2208
        %s2222 = scalar_lea.vmem [#allocation4], 48
        %v2223 = vld [vmem:[%s2222] sm:$0xff]
        %v2224 = vld [vmem:[%s2222 + $0x8] sm:$0xff]
        %v2225 = vsub.f32 %v2223, %v2220
        %v2226 = vsub.f32 %v2224, %v2221
        %v2227 = vmul.f32 %v2225, 0.5
        %v2228 = vmul.f32 %v2226, 0.5
        %v2229 = vadd.f32 %v2220, %v2227
        %v2230 = vadd.f32 %v2221, %v2228
        %vm2231 = vcmp.ge.f32.partialorder %v2229, 1.0
        %vm2232 = vcmp.ge.f32.partialorder %v2230, 1.0
        %v2233 = vsel %vm2231, 1, 0
        %v2234 = vsel %vm2232, 1, 0
        %v2235 = vcvt.s32.f32 %v2233
        %v2236 = vcvt.s32.f32 %v2234
        %v2237 = vpack.c.bf16 %v2235, %v2235
        %v2238 = vpack.c.bf16 %v2236, %v2236
        %s2239 = scalar_lea.vmem %s325, 24 [#allocation16]
        %2240 = vst [vmem:[%s2239] sm:$0xf] %v2237
        %2241 = vst [vmem:[%s2239 + $0x4] sm:$0xf] %v2238
        %v2242 = vsel %vm2231, 0.0, %v2229
        %v2243 = vsel %vm2232, 0.0, %v2230
        %s2244 = scalar_lea.vmem [#allocation4], 64
        %v2245 = vld [vmem:[%s2244] sm:$0xff]
        %v2246 = vld [vmem:[%s2244 + $0x8] sm:$0xff]
        %v2247 = vsub.f32 %v2245, %v2242
        %v2248 = vsub.f32 %v2246, %v2243
        %v2249 = vmul.f32 %v2247, 0.5
        %v2250 = vmul.f32 %v2248, 0.5
        %v2251 = vadd.f32 %v2242, %v2249
        %v2252 = vadd.f32 %v2243, %v2250
        %vm2253 = vcmp.ge.f32.partialorder %v2251, 1.0
        %vm2254 = vcmp.ge.f32.partialorder %v2252, 1.0
        %v2255 = vsel %vm2253, 1, 0
        %v2256 = vsel %vm2254, 1, 0
        %v2257 = vcvt.s32.f32 %v2255
        %v2258 = vcvt.s32.f32 %v2256
        %v2259 = vpack.c.bf16 %v2257, %v2257
        %v2260 = vpack.c.bf16 %v2258, %v2258
        %s2261 = scalar_lea.vmem %s325, 32 [#allocation16]
        %2262 = vst [vmem:[%s2261] sm:$0xf] %v2259
        %2263 = vst [vmem:[%s2261 + $0x4] sm:$0xf] %v2260
        %v2264 = vsel %vm2253, 0.0, %v2251
        %v2265 = vsel %vm2254, 0.0, %v2252
        %s2266 = scalar_lea.vmem [#allocation4], 80
        %v2267 = vld [vmem:[%s2266] sm:$0xff]
        %v2268 = vld [vmem:[%s2266 + $0x8] sm:$0xff]
        %v2269 = vsub.f32 %v2267, %v2264
        %v2270 = vsub.f32 %v2268, %v2265
        %v2271 = vmul.f32 %v2269, 0.5
        %v2272 = vmul.f32 %v2270, 0.5
        %v2273 = vadd.f32 %v2264, %v2271
        %v2274 = vadd.f32 %v2265, %v2272
        %vm2275 = vcmp.ge.f32.partialorder %v2273, 1.0
        %vm2276 = vcmp.ge.f32.partialorder %v2274, 1.0
        %v2277 = vsel %vm2275, 1, 0
        %v2278 = vsel %vm2276, 1, 0
        %v2279 = vcvt.s32.f32 %v2277
        %v2280 = vcvt.s32.f32 %v2278
        %v2281 = vpack.c.bf16 %v2279, %v2279
        %v2282 = vpack.c.bf16 %v2280, %v2280
        %s2283 = scalar_lea.vmem %s325, 40 [#allocation16]
        %2284 = vst [vmem:[%s2283] sm:$0xf] %v2281
        %2285 = vst [vmem:[%s2283 + $0x4] sm:$0xf] %v2282
        %v2286 = vsel %vm2275, 0.0, %v2273
        %v2287 = vsel %vm2276, 0.0, %v2274
        %s2288 = scalar_lea.vmem [#allocation4], 96
        %v2289 = vld [vmem:[%s2288] sm:$0xff]
        %v2290 = vld [vmem:[%s2288 + $0x8] sm:$0xff]
        %v2291 = vsub.f32 %v2289, %v2286
        %v2292 = vsub.f32 %v2290, %v2287
        %v2293 = vmul.f32 %v2291, 0.5
        %v2294 = vmul.f32 %v2292, 0.5
        %v2295 = vadd.f32 %v2286, %v2293
        %v2296 = vadd.f32 %v2287, %v2294
        %vm2297 = vcmp.ge.f32.partialorder %v2295, 1.0
        %vm2298 = vcmp.ge.f32.partialorder %v2296, 1.0
        %v2299 = vsel %vm2297, 1, 0
        %v2300 = vsel %vm2298, 1, 0
        %v2301 = vcvt.s32.f32 %v2299
        %v2302 = vcvt.s32.f32 %v2300
        %v2303 = vpack.c.bf16 %v2301, %v2301
        %v2304 = vpack.c.bf16 %v2302, %v2302
        %s2305 = scalar_lea.vmem %s325, 48 [#allocation16]
        %2306 = vst [vmem:[%s2305] sm:$0xf] %v2303
        %2307 = vst [vmem:[%s2305 + $0x4] sm:$0xf] %v2304
        %v2308 = vsel %vm2297, 0.0, %v2295
        %v2309 = vsel %vm2298, 0.0, %v2296
        %s2310 = scalar_lea.vmem [#allocation4], 112
        %v2311 = vld [vmem:[%s2310] sm:$0xff]
        %v2312 = vld [vmem:[%s2310 + $0x8] sm:$0xff]
        %v2313 = vsub.f32 %v2311, %v2308
        %v2314 = vsub.f32 %v2312, %v2309
        %v2315 = vmul.f32 %v2313, 0.5
        %v2316 = vmul.f32 %v2314, 0.5
        %v2317 = vadd.f32 %v2308, %v2315
        %v2318 = vadd.f32 %v2309, %v2316
        %vm2319 = vcmp.ge.f32.partialorder %v2317, 1.0
        %vm2320 = vcmp.ge.f32.partialorder %v2318, 1.0
        %v2321 = vsel %vm2319, 1, 0
        %v2322 = vsel %vm2320, 1, 0
        %v2323 = vcvt.s32.f32 %v2321
        %v2324 = vcvt.s32.f32 %v2322
        %v2325 = vpack.c.bf16 %v2323, %v2323
        %v2326 = vpack.c.bf16 %v2324, %v2324
        %s2327 = scalar_lea.vmem %s325, 56 [#allocation16]
        %2328 = vst [vmem:[%s2327] sm:$0xf] %v2325
        %2329 = vst [vmem:[%s2327 + $0x4] sm:$0xf] %v2326
        %v2330 = vsel %vm2319, 0.0, %v2317
        %v2331 = vsel %vm2320, 0.0, %v2318
        %2332 = vst [vmem:[#allocation6] sm:$0xff] %v2330
        %2333 = vst [vmem:[#allocation6 + $0x8] sm:$0xff] %v2331
        %s2334 = sand.u32 %s158, 1
        %s2335 = scalar_lea.sflag [#allocation9], %s2334
        %s2336 = sand.u32 %s158, 1
        %s2337 = smul.addr %s2336, 64
        %s2338 = scalar_lea.vmem [#allocation16], %s2337
        // Predicated region
        $region65: #{tpu_custom_call.1} parent=39 // pred_check
          %p2339 = pneg %p168
        $region66: #{tpu_custom_call.1} parent=39 // pred_check_branch
          %2341 = sbr.rel (%p2339) target = $region68
        $region67: #{tpu_custom_call.1} parent=39 // pred_region
          %s2342 = smul.u32 8, %s29
          %2344 = vsyncadd %s2335, 0
          %s2345 = smul.addr %s2342, 2
          %s2346 = smul.addr %s28, 16
          %s2347 = sadd.s32 %s2345, %s2346
          %s2348 = smul.addr %s2347, 4
          %s2349 = scalar_lea.hbm %s5, %s2348
          %s2350 = sshll.u32 %s2338, 4
          %s2351 = int_to_ptr.vmem [resolvable:$true] %s2350
          %s2352 = sshll.u32 %s2349, 4
          %s2353 = int_to_ptr.hbm [resolvable:$true] %s2352
          %2358 = dma.vmem_to_hbm [thread:$0]  %s2351, 1024, %s2353, %s2335, 64, 64, 4
        $region68: #{tpu_custom_call.1} parent=39 // pred_fallthru
          _
      $region40: #{tpu_custom_call.1} parent=5 // pred_fallthru
        _
      %p2359 = scmp.le.s32.totalorder 2, %s19
      // Predicated region
      $region69: #{tpu_custom_call.1} parent=5 // pred_check
        %p2360 = pneg %p2359
      $region70: #{tpu_custom_call.1} parent=5 // pred_check_branch
        %2362 = sbr.rel (%p2360) target = $region72
      $region71: #{tpu_custom_call.1} parent=5 // pred_region
        %s2363 = ssub.s32 %s19, 2
        // Predicated region
        $region73: #{tpu_custom_call.1} parent=71 // pred_check
          %p2364 = pneg %p174
        $region74: #{tpu_custom_call.1} parent=71 // pred_check_branch
          %2366 = sbr.rel (%p2364) target = $region76
        $region75: #{tpu_custom_call.1} parent=71 // pred_region
          %s2367 = sand.u32 %s159, 1
          %s2368 = scalar_lea.sflag [#allocation9], %s2367
          %s2369 = sand.u32 %s159, 1
          %s2370 = smul.addr %s2369, 64
          %s2371 = scalar_lea.vmem [#allocation16], %s2370
          %2373 = dma.done %s2368, 1024
        $region76: #{tpu_custom_call.1} parent=71 // pred_fallthru
          _
      $region72: #{tpu_custom_call.1} parent=5 // pred_fallthru
        _
    $region6: #{tpu_custom_call.1} parent=1 // loop_footer
      %s23 = sadd.s32 1, %s19
    $region7: #{tpu_custom_call.1} parent=1 // loop_footer_branch
      %18 = sbr.rel target = $region3
    $region8: #{tpu_custom_call.1} parent=1 // loop_exit
      _
    %2374 = vsyncpa [#allocation8], 1
    %s2375 = scalar_lea.sflag [#allocation8], 1
    %2376 = vsyncpa %s2375, 1
    %2377 = vsyncpa [#allocation11], 1
    %2378 = vsyncpa [#allocation14], 1
    %2379 = vsyncpa [#allocation9], 1
    %s2380 = scalar_lea.sflag [#allocation9], 1
    %2381 = vsyncpa %s2380, 1

</llo_original>
